<compile_context>
chip_gen: v7x
topology: tpu7x:2x2x1
jax: 0.10.0
libtpu: 0.0.40
codegen_flags: <defaults>
</compile_context>

<pallas_src>
import jax
import jax.numpy as jnp
from jax.experimental import pallas as pl
from jax.experimental.pallas import tpu as pltpu


def _round_up(x, m):
    return ((x + m - 1) // m) * m


def _pad2(a, rows, cols):
    return jnp.pad(a, ((0, rows - a.shape[0]), (0, cols - a.shape[1])))


def dcn_forward_kernel(x_ref, w1_ref, b1_ref, w2_ref, b2_ref,
                       w3_ref, b3_ref, w4_ref, b4_ref,
                       z_ref, recon_ref):
    # Cast the input tile to the matmul operand dtype on-chip (VPU; avoids a
    # padded/cast HBM copy of x in the wrapper).
    x = x_ref[...].astype(w1_ref.dtype)

    # encoder: Linear(input_dim -> H) + ReLU   (MXU, f32 accumulation)
    h = jnp.dot(x, w1_ref[...], preferred_element_type=jnp.float32) + b1_ref[...]
    h = jnp.maximum(h, 0.0)

    # _enc_mu: Linear(H -> z_dim)
    z = jnp.dot(h.astype(w2_ref.dtype), w2_ref[...],
                preferred_element_type=jnp.float32) + b2_ref[...]

    # decoder: Linear(z_dim -> H) + ReLU
    d = jnp.dot(z.astype(w3_ref.dtype), w3_ref[...],
                preferred_element_type=jnp.float32) + b3_ref[...]
    d = jnp.maximum(d, 0.0)

    # _dec: Linear(H -> input_dim) + Sigmoid (binary=True)
    logits = jnp.dot(d.astype(w4_ref.dtype), w4_ref[...],
                     preferred_element_type=jnp.float32) + b4_ref[...]
    recon = jax.nn.sigmoid(logits)

    z_ref[...] = z.astype(z_ref.dtype)
    recon_ref[...] = recon.astype(recon_ref.dtype)


def dcn_forward(x, params, *, tb=1024, compute_dtype=jnp.bfloat16,
                out_dtype=None, single_buffer_weights=True,
                vmem_budget_bytes=None, vmem_limit_bytes=None):
    """Run the DCN forward pass.  x: (B, input_dim).  Returns (z, recon)."""
    B, input_dim = x.shape
    w1, b1, w2, b2, w3, b3, w4, b4 = params
    H = w1.shape[1]
    z_dim = w2.shape[1]

    comp = jnp.dtype(compute_dtype)
    if out_dtype is None:
        out_dtype = jnp.float32 if comp == jnp.dtype(jnp.float32) else jnp.bfloat16
    out_dt = jnp.dtype(out_dtype)

    # Per-generation VMEM knobs from the chip's actual capacity (v5e/v6e have
    # 128 MiB per TensorCore, v7x 64 MiB; the scoped *default* is much lower,
    # e.g. 16 MiB on v5e, so we always set vmem_limit_bytes explicitly).
    if vmem_budget_bytes is None or vmem_limit_bytes is None:
        try:
            cap = int(pltpu.get_tpu_info().vmem_capacity_bytes)
        except Exception:
            cap = 64 * 1024 * 1024  # conservative (v7x-sized) fallback
        if vmem_budget_bytes is None:
            vmem_budget_bytes = int(cap * 0.65)
        if vmem_limit_bytes is None:
            vmem_limit_bytes = int(cap * 0.80)

    # Lane-dense feature dims for every matmul RHS and every output store.
    # x's own feature dim stays full-extent (legal since it equals the array
    # dim), so x is never re-materialized in HBM.
    Hp = _round_up(H, 128)
    Zp = _round_up(z_dim, 128)
    Dp = _round_up(input_dim, 128)

    comp_b = comp.itemsize
    out_b = out_dt.itemsize
    x_b = jnp.dtype(x.dtype).itemsize

    def vmem_estimate(t, wbuf):
        x_tile = 2 * t * input_dim * x_b                    # double-buffered x tile
        out_tiles = 2 * t * (Zp + Dp) * out_b               # double-buffered z + recon
        weights = wbuf * (input_dim * Hp + Hp * Zp + Zp * Hp + Hp * Dp) * comp_b
        biases = wbuf * 8 * (2 * Hp + Zp + Dp) * 4          # (1,n) pads to 8 sublanes
        inter = t * (Hp + max(Hp, Dp) + Zp) * 4             # peak live f32 intermediates
        return x_tile + out_tiles + weights + biases + inter

    Bp0 = _round_up(B, 8)

    def pick_tile(wbuf):
        if Bp0 <= 128:
            return Bp0, Bp0                                  # single full-extent tile
        t = max(128, min(_round_up(tb, 128), _round_up(Bp0, 128)))
        while t > 128 and vmem_estimate(t, wbuf) > vmem_budget_bytes:
            t -= 128
        # >= 2 grid steps when the batch allows, so both v7x TensorCores get
        # work under dimension_semantics=("parallel",). Free on 1-TC chips.
        if Bp0 >= 256:
            t = min(t, _round_up(pl.cdiv(Bp0, 2), 128))
        # Re-balance so batch-padding waste is bounded.
        nsteps = pl.cdiv(Bp0, t)
        t = _round_up(pl.cdiv(Bp0, nsteps), 128)
        return t, nsteps * t

    # Zero-pad weights/biases once (they stay resident in VMEM).  Zero padding
    # preserves semantics: padded output columns of every layer are exactly 0
    # pre-activation and the padded output columns/rows are sliced away below.
    w1p = _pad2(w1, input_dim, Hp).astype(comp)
    w2p = _pad2(w2, Hp, Zp).astype(comp)
    w3p = _pad2(w3, Zp, Hp).astype(comp)
    w4p = _pad2(w4, Hp, Dp).astype(comp)
    b1p = _pad2(b1, 1, Hp).astype(jnp.float32)
    b2p = _pad2(b2, 1, Zp).astype(jnp.float32)
    b3p = _pad2(b3, 1, Hp).astype(jnp.float32)
    b4p = _pad2(b4, 1, Dp).astype(jnp.float32)

    def run(single_buffer):
        wbuf = 1 if single_buffer else 2
        tb_eff, Bp = pick_tile(wbuf)
        xp = x if Bp == B else jnp.pad(x, ((0, Bp - B), (0, 0)))

        spec_kwargs = {"pipeline_mode": pl.Buffered(1)} if single_buffer else {}
        full = lambda shape: pl.BlockSpec(shape, lambda i: (0, 0), **spec_kwargs)

        z_p, recon_p = pl.pallas_call(
            dcn_forward_kernel,
            grid_spec=pltpu.PrefetchScalarGridSpec(
                num_scalar_prefetch=0,
                grid=(Bp // tb_eff,),
                in_specs=[
                    pl.BlockSpec((tb_eff, input_dim), lambda i: (i, 0)),  # x tile
                    full((input_dim, Hp)), full((1, Hp)),                 # encoder
                    full((Hp, Zp)), full((1, Zp)),                        # _enc_mu
                    full((Zp, Hp)), full((1, Hp)),                        # decoder
                    full((Hp, Dp)), full((1, Dp)),                        # _dec
                ],
                out_specs=[
                    pl.BlockSpec((tb_eff, Zp), lambda i: (i, 0)),         # z
                    pl.BlockSpec((tb_eff, Dp), lambda i: (i, 0)),         # recon
                ],
            ),
            out_shape=(
                jax.ShapeDtypeStruct((Bp, Zp), out_dt),
                jax.ShapeDtypeStruct((Bp, Dp), out_dt),
            ),
            compiler_params=pltpu.CompilerParams(
                dimension_semantics=("parallel",),
                vmem_limit_bytes=vmem_limit_bytes,
            ),
        )(xp, w1p, b1p, w2p, b2p, w3p, b3p, w4p, b4p)

        return z_p[:B, :z_dim], recon_p[:B, :input_dim]

    if not single_buffer_weights:
        return run(False)
    try:
        return run(True)
    except Exception:
        # Buffered(1) not supported by this Pallas build: fall back to default
        # (double-buffered) weight specs; any genuine error re-raises here.
        return run(False)


def init_params(key, input_dim, hidden, z_dim):
    """Deterministic PyTorch-Linear-style init; weights already transposed to
    (in, out), biases as (1, out)."""
    def linear(key, fan_in, fan_out):
        kw, kb = jax.random.split(key)
        bound = 1.0 / jnp.sqrt(fan_in)
        w = jax.random.uniform(kw, (fan_in, fan_out), jnp.float32, -bound, bound)
        b = jax.random.uniform(kb, (1, fan_out), jnp.float32, -bound, bound)
        return w, b

    k1, k2, k3, k4 = jax.random.split(key, 4)
    w1, b1 = linear(k1, input_dim, hidden)   # encoder Linear
    w2, b2 = linear(k2, hidden, z_dim)       # _enc_mu
    w3, b3 = linear(k3, z_dim, hidden)       # decoder Linear
    w4, b4 = linear(k4, hidden, input_dim)   # _dec
    return (w1, b1, w2, b2, w3, b3, w4, b4)


def dcn_forward_ref(x, params):
    w1, b1, w2, b2, w3, b3, w4, b4 = params
    h = jnp.maximum(x @ w1 + b1, 0.0)
    z = h @ w2 + b2
    d = jnp.maximum(z @ w3 + b3, 0.0)
    recon = jax.nn.sigmoid(d @ w4 + b4)
    return z, recon


if __name__ == "__main__":
    # Small shapes consistent with the module (input_dim, encodeLayer=[H], z_dim).
    B, input_dim, hidden, z_dim = 16, 64, 32, 16

    key = jax.random.PRNGKey(0)
    kx, kp = jax.random.split(key)
    x = jax.random.uniform(kx, (B, input_dim), jnp.float32)  # "binary-ish" inputs
    params = init_params(kp, input_dim, hidden, z_dim)

    z_ref, recon_ref = dcn_forward_ref(x, params)

    # f32 accuracy path: must match the reference tightly.
    z, recon = dcn_forward(x, params, compute_dtype=jnp.float32,
                           out_dtype=jnp.float32)
    jax.block_until_ready((z, recon))
    assert z.shape == (B, z_dim) and recon.shape == (B, input_dim)
    assert jnp.allclose(z, z_ref, atol=1e-5, rtol=1e-5)
    assert jnp.allclose(recon, recon_ref, atol=1e-5, rtol=1e-5)

    # Default fast path: bf16 matmul operands + bf16 outputs, f32 accumulation.
    z_bf, recon_bf = dcn_forward(x, params)
    jax.block_until_ready((z_bf, recon_bf))
    assert z_bf.shape == (B, z_dim) and recon_bf.shape == (B, input_dim)
    assert jnp.allclose(z_bf.astype(jnp.float32), z_ref, atol=5e-2, rtol=5e-2)
    assert jnp.allclose(recon_bf.astype(jnp.float32), recon_ref, atol=5e-2, rtol=5e-2)

    # Multi-tile path (grid > 1, batch padding + re-balance): still small shapes.
    B2, D2, H2, Z2 = 300, 200, 96, 10
    kx2, kp2 = jax.random.split(jax.random.PRNGKey(0), 2)
    x2 = jax.random.uniform(kx2, (B2, D2), jnp.float32)
    params2 = init_params(kp2, D2, H2, Z2)
    z2_ref, recon2_ref = dcn_forward_ref(x2, params2)
    z2, recon2 = dcn_forward(x2, params2)
    jax.block_until_ready((z2, recon2))
    assert z2.shape == (B2, Z2) and recon2.shape == (B2, D2)
    assert jnp.allclose(z2.astype(jnp.float32), z2_ref, atol=7e-2, rtol=7e-2)
    assert jnp.allclose(recon2.astype(jnp.float32), recon2_ref, atol=7e-2, rtol=7e-2)

    print("KERNEL_OK")
</pallas_src>

<mosaic_0001>
module attributes {stable_mosaic.version = 11 : i64} {
  func.func @dcn_forward_kernel(%arg0: i32, %arg1: memref<16x64xf32, #tpu.memory_space<vmem>>, %arg2: memref<64x128xf32, #tpu.memory_space<vmem>>, %arg3: memref<1x128xf32, #tpu.memory_space<vmem>>, %arg4: memref<128x128xf32, #tpu.memory_space<vmem>>, %arg5: memref<1x128xf32, #tpu.memory_space<vmem>>, %arg6: memref<128x128xf32, #tpu.memory_space<vmem>>, %arg7: memref<1x128xf32, #tpu.memory_space<vmem>>, %arg8: memref<128x128xf32, #tpu.memory_space<vmem>>, %arg9: memref<1x128xf32, #tpu.memory_space<vmem>>, %arg10: memref<16x128xf32, #tpu.memory_space<vmem>>, %arg11: memref<16x128xf32, #tpu.memory_space<vmem>>) attributes {dimension_semantics = [#tpu.dimension_semantics<parallel>], iteration_bounds = array<i64: 1>, scalar_prefetch = 0 : i64, scratch_operands = 0 : i64, tpu.core_type = #tpu.core_type<tc>, window_params = [{transform_indices = @transform_0, window_bounds = array<i64: 16, 64>}, {pipeline_mode = #tpu.pipeline_mode<synchronous>, transform_indices = @transform_1, window_bounds = array<i64: 64, 128>}, {pipeline_mode = #tpu.pipeline_mode<synchronous>, transform_indices = @transform_2, window_bounds = array<i64: 1, 128>}, {pipeline_mode = #tpu.pipeline_mode<synchronous>, transform_indices = @transform_3, window_bounds = array<i64: 128, 128>}, {pipeline_mode = #tpu.pipeline_mode<synchronous>, transform_indices = @transform_4, window_bounds = array<i64: 1, 128>}, {pipeline_mode = #tpu.pipeline_mode<synchronous>, transform_indices = @transform_5, window_bounds = array<i64: 128, 128>}, {pipeline_mode = #tpu.pipeline_mode<synchronous>, transform_indices = @transform_6, window_bounds = array<i64: 1, 128>}, {pipeline_mode = #tpu.pipeline_mode<synchronous>, transform_indices = @transform_7, window_bounds = array<i64: 128, 128>}, {pipeline_mode = #tpu.pipeline_mode<synchronous>, transform_indices = @transform_8, window_bounds = array<i64: 1, 128>}, {transform_indices = @transform_9, window_bounds = array<i64: 16, 128>}, {transform_indices = @transform_10, window_bounds = array<i64: 16, 128>}]} {
    %c0 = arith.constant 0 : index
    %c0_0 = arith.constant 0 : index
    %0 = vector.load %arg1[%c0, %c0_0] : memref<16x64xf32, #tpu.memory_space<vmem>>, vector<16x64xf32>
    %c0_1 = arith.constant 0 : index
    %c0_2 = arith.constant 0 : index
    %1 = vector.load %arg2[%c0_1, %c0_2] : memref<64x128xf32, #tpu.memory_space<vmem>>, vector<64x128xf32>
    %cst = arith.constant dense<0.000000e+00> : vector<16x128xf32>
    %2 = tpu.matmul %0, %1, %cst {dimension_numbers = #tpu.dot_dimension_numbers<[1], [0], [0], [1], [0, 0, 1, 1], [], []>} : vector<16x64xf32>, vector<64x128xf32>, vector<16x128xf32> -> vector<16x128xf32>
    %c0_3 = arith.constant 0 : index
    %c0_4 = arith.constant 0 : index
    %3 = vector.load %arg3[%c0_3, %c0_4] : memref<1x128xf32, #tpu.memory_space<vmem>>, vector<1x128xf32>
    %4 = vector.broadcast %3 : vector<1x128xf32> to vector<16x128xf32>
    %5 = arith.addf %2, %4 : vector<16x128xf32>
    %cst_5 = arith.constant 0.000000e+00 : f32
    %6 = vector.broadcast %cst_5 : f32 to vector<16x128xf32>
    %7 = arith.maximumf %5, %6 : vector<16x128xf32>
    %c0_6 = arith.constant 0 : index
    %c0_7 = arith.constant 0 : index
    %8 = vector.load %arg4[%c0_6, %c0_7] : memref<128x128xf32, #tpu.memory_space<vmem>>, vector<128x128xf32>
    %cst_8 = arith.constant dense<0.000000e+00> : vector<16x128xf32>
    %9 = tpu.matmul %7, %8, %cst_8 {dimension_numbers = #tpu.dot_dimension_numbers<[1], [0], [0], [1], [0, 0, 1, 1], [], []>} : vector<16x128xf32>, vector<128x128xf32>, vector<16x128xf32> -> vector<16x128xf32>
    %c0_9 = arith.constant 0 : index
    %c0_10 = arith.constant 0 : index
    %10 = vector.load %arg5[%c0_9, %c0_10] : memref<1x128xf32, #tpu.memory_space<vmem>>, vector<1x128xf32>
    %11 = vector.broadcast %10 : vector<1x128xf32> to vector<16x128xf32>
    %12 = arith.addf %9, %11 : vector<16x128xf32>
    %c0_11 = arith.constant 0 : index
    %c0_12 = arith.constant 0 : index
    %13 = vector.load %arg6[%c0_11, %c0_12] : memref<128x128xf32, #tpu.memory_space<vmem>>, vector<128x128xf32>
    %cst_13 = arith.constant dense<0.000000e+00> : vector<16x128xf32>
    %14 = tpu.matmul %12, %13, %cst_13 {dimension_numbers = #tpu.dot_dimension_numbers<[1], [0], [0], [1], [0, 0, 1, 1], [], []>} : vector<16x128xf32>, vector<128x128xf32>, vector<16x128xf32> -> vector<16x128xf32>
    %c0_14 = arith.constant 0 : index
    %c0_15 = arith.constant 0 : index
    %15 = vector.load %arg7[%c0_14, %c0_15] : memref<1x128xf32, #tpu.memory_space<vmem>>, vector<1x128xf32>
    %16 = vector.broadcast %15 : vector<1x128xf32> to vector<16x128xf32>
    %17 = arith.addf %14, %16 : vector<16x128xf32>
    %cst_16 = arith.constant 0.000000e+00 : f32
    %18 = vector.broadcast %cst_16 : f32 to vector<16x128xf32>
    %19 = arith.maximumf %17, %18 : vector<16x128xf32>
    %c0_17 = arith.constant 0 : index
    %c0_18 = arith.constant 0 : index
    %20 = vector.load %arg8[%c0_17, %c0_18] : memref<128x128xf32, #tpu.memory_space<vmem>>, vector<128x128xf32>
    %cst_19 = arith.constant dense<0.000000e+00> : vector<16x128xf32>
    %21 = tpu.matmul %19, %20, %cst_19 {dimension_numbers = #tpu.dot_dimension_numbers<[1], [0], [0], [1], [0, 0, 1, 1], [], []>} : vector<16x128xf32>, vector<128x128xf32>, vector<16x128xf32> -> vector<16x128xf32>
    %c0_20 = arith.constant 0 : index
    %c0_21 = arith.constant 0 : index
    %22 = vector.load %arg9[%c0_20, %c0_21] : memref<1x128xf32, #tpu.memory_space<vmem>>, vector<1x128xf32>
    %23 = vector.broadcast %22 : vector<1x128xf32> to vector<16x128xf32>
    %24 = arith.addf %21, %23 : vector<16x128xf32>
    %25 = arith.negf %24 : vector<16x128xf32>
    %26 = math.exp %25 : vector<16x128xf32>
    %cst_22 = arith.constant 1.000000e+00 : f32
    %27 = vector.broadcast %cst_22 : f32 to vector<16x128xf32>
    %28 = arith.addf %27, %26 : vector<16x128xf32>
    %29 = arith.divf %27, %28 : vector<16x128xf32>
    %c0_23 = arith.constant 0 : index
    %c0_24 = arith.constant 0 : index
    %30 = vector.load %arg10[%c0_23, %c0_24] : memref<16x128xf32, #tpu.memory_space<vmem>>, vector<16x128xf32>
    tpu.vector_store %arg10[%c0_23, %c0_24], %12 {strides = array<i32>} : memref<16x128xf32, #tpu.memory_space<vmem>>, vector<16x128xf32>,
    %c0_25 = arith.constant 0 : index
    %c0_26 = arith.constant 0 : index
    %31 = vector.load %arg11[%c0_25, %c0_26] : memref<16x128xf32, #tpu.memory_space<vmem>>, vector<16x128xf32>
    tpu.vector_store %arg11[%c0_25, %c0_26], %29 {strides = array<i32>} : memref<16x128xf32, #tpu.memory_space<vmem>>, vector<16x128xf32>,
    return
  }
  func.func @transform_0(%arg0: i32) -> (i32, i32) {
    %c0_i32 = arith.constant 0 : i32
    %c0_i32_0 = arith.constant 0 : i32
    return %arg0, %c0_i32 : i32, i32
  }
  func.func @transform_1(%arg0: i32) -> (i32, i32) {
    %c0_i32 = arith.constant 0 : i32
    %c0_i32_0 = arith.constant 0 : i32
    %c0_i32_1 = arith.constant 0 : i32
    return %c0_i32, %c0_i32_0 : i32, i32
  }
  func.func @transform_2(%arg0: i32) -> (i32, i32) {
    %c0_i32 = arith.constant 0 : i32
    %c0_i32_0 = arith.constant 0 : i32
    %c0_i32_1 = arith.constant 0 : i32
    return %c0_i32, %c0_i32_0 : i32, i32
  }
  func.func @transform_3(%arg0: i32) -> (i32, i32) {
    %c0_i32 = arith.constant 0 : i32
    %c0_i32_0 = arith.constant 0 : i32
    %c0_i32_1 = arith.constant 0 : i32
    return %c0_i32, %c0_i32_0 : i32, i32
  }
  func.func @transform_4(%arg0: i32) -> (i32, i32) {
    %c0_i32 = arith.constant 0 : i32
    %c0_i32_0 = arith.constant 0 : i32
    %c0_i32_1 = arith.constant 0 : i32
    return %c0_i32, %c0_i32_0 : i32, i32
  }
  func.func @transform_5(%arg0: i32) -> (i32, i32) {
    %c0_i32 = arith.constant 0 : i32
    %c0_i32_0 = arith.constant 0 : i32
    %c0_i32_1 = arith.constant 0 : i32
    return %c0_i32, %c0_i32_0 : i32, i32
  }
  func.func @transform_6(%arg0: i32) -> (i32, i32) {
    %c0_i32 = arith.constant 0 : i32
    %c0_i32_0 = arith.constant 0 : i32
    %c0_i32_1 = arith.constant 0 : i32
    return %c0_i32, %c0_i32_0 : i32, i32
  }
  func.func @transform_7(%arg0: i32) -> (i32, i32) {
    %c0_i32 = arith.constant 0 : i32
    %c0_i32_0 = arith.constant 0 : i32
    %c0_i32_1 = arith.constant 0 : i32
    return %c0_i32, %c0_i32_0 : i32, i32
  }
  func.func @transform_8(%arg0: i32) -> (i32, i32) {
    %c0_i32 = arith.constant 0 : i32
    %c0_i32_0 = arith.constant 0 : i32
    %c0_i32_1 = arith.constant 0 : i32
    return %c0_i32, %c0_i32_0 : i32, i32
  }
  func.func @transform_9(%arg0: i32) -> (i32, i32) {
    %c0_i32 = arith.constant 0 : i32
    %c0_i32_0 = arith.constant 0 : i32
    return %arg0, %c0_i32 : i32, i32
  }
  func.func @transform_10(%arg0: i32) -> (i32, i32) {
    %c0_i32 = arith.constant 0 : i32
    %c0_i32_0 = arith.constant 0 : i32
    return %arg0, %c0_i32 : i32, i32
  }
}

module attributes {stable_mosaic.version = 11 : i64} {
  func.func @dcn_forward_kernel(%arg0: i32, %arg1: memref<16x64xf32, #tpu.memory_space<vmem>>, %arg2: memref<64x128xf32, #tpu.memory_space<vmem>>, %arg3: memref<1x128xf32, #tpu.memory_space<vmem>>, %arg4: memref<128x128xf32, #tpu.memory_space<vmem>>, %arg5: memref<1x128xf32, #tpu.memory_space<vmem>>, %arg6: memref<128x128xf32, #tpu.memory_space<vmem>>, %arg7: memref<1x128xf32, #tpu.memory_space<vmem>>, %arg8: memref<128x128xf32, #tpu.memory_space<vmem>>, %arg9: memref<1x128xf32, #tpu.memory_space<vmem>>, %arg10: memref<16x128xf32, #tpu.memory_space<vmem>>, %arg11: memref<16x128xf32, #tpu.memory_space<vmem>>) attributes {dimension_semantics = [#tpu.dimension_semantics<parallel>], iteration_bounds = array<i64: 1>, scalar_prefetch = 0 : i64, scratch_operands = 0 : i64, tpu.core_type = #tpu.core_type<tc>, window_params = [{transform_indices = @transform_0, window_bounds = array<i64: 16, 64>}, {pipeline_mode = #tpu.pipeline_mode<synchronous>, transform_indices = @transform_1, window_bounds = array<i64: 64, 128>}, {pipeline_mode = #tpu.pipeline_mode<synchronous>, transform_indices = @transform_2, window_bounds = array<i64: 1, 128>}, {pipeline_mode = #tpu.pipeline_mode<synchronous>, transform_indices = @transform_3, window_bounds = array<i64: 128, 128>}, {pipeline_mode = #tpu.pipeline_mode<synchronous>, transform_indices = @transform_4, window_bounds = array<i64: 1, 128>}, {pipeline_mode = #tpu.pipeline_mode<synchronous>, transform_indices = @transform_5, window_bounds = array<i64: 128, 128>}, {pipeline_mode = #tpu.pipeline_mode<synchronous>, transform_indices = @transform_6, window_bounds = array<i64: 1, 128>}, {pipeline_mode = #tpu.pipeline_mode<synchronous>, transform_indices = @transform_7, window_bounds = array<i64: 128, 128>}, {pipeline_mode = #tpu.pipeline_mode<synchronous>, transform_indices = @transform_8, window_bounds = array<i64: 1, 128>}, {transform_indices = @transform_9, window_bounds = array<i64: 16, 128>}, {transform_indices = @transform_10, window_bounds = array<i64: 16, 128>}]} {
    %c0 = arith.constant 0 : index
    %c0_0 = arith.constant 0 : index
    %0 = vector.load %arg1[%c0, %c0_0] : memref<16x64xf32, #tpu.memory_space<vmem>>, vector<16x64xf32>
    %c0_1 = arith.constant 0 : index
    %c0_2 = arith.constant 0 : index
    %1 = vector.load %arg2[%c0_1, %c0_2] : memref<64x128xf32, #tpu.memory_space<vmem>>, vector<64x128xf32>
    %cst = arith.constant dense<0.000000e+00> : vector<16x128xf32>
    %2 = tpu.matmul %0, %1, %cst {dimension_numbers = #tpu.dot_dimension_numbers<[1], [0], [0], [1], [0, 0, 1, 1], [], []>} : vector<16x64xf32>, vector<64x128xf32>, vector<16x128xf32> -> vector<16x128xf32>
    %c0_3 = arith.constant 0 : index
    %c0_4 = arith.constant 0 : index
    %3 = vector.load %arg3[%c0_3, %c0_4] : memref<1x128xf32, #tpu.memory_space<vmem>>, vector<1x128xf32>
    %4 = vector.broadcast %3 : vector<1x128xf32> to vector<16x128xf32>
    %5 = arith.addf %2, %4 : vector<16x128xf32>
    %cst_5 = arith.constant 0.000000e+00 : f32
    %6 = vector.broadcast %cst_5 : f32 to vector<16x128xf32>
    %7 = arith.maximumf %5, %6 : vector<16x128xf32>
    %c0_6 = arith.constant 0 : index
    %c0_7 = arith.constant 0 : index
    %8 = vector.load %arg4[%c0_6, %c0_7] : memref<128x128xf32, #tpu.memory_space<vmem>>, vector<128x128xf32>
    %cst_8 = arith.constant dense<0.000000e+00> : vector<16x128xf32>
    %9 = tpu.matmul %7, %8, %cst_8 {dimension_numbers = #tpu.dot_dimension_numbers<[1], [0], [0], [1], [0, 0, 1, 1], [], []>} : vector<16x128xf32>, vector<128x128xf32>, vector<16x128xf32> -> vector<16x128xf32>
    %c0_9 = arith.constant 0 : index
    %c0_10 = arith.constant 0 : index
    %10 = vector.load %arg5[%c0_9, %c0_10] : memref<1x128xf32, #tpu.memory_space<vmem>>, vector<1x128xf32>
    %11 = vector.broadcast %10 : vector<1x128xf32> to vector<16x128xf32>
    %12 = arith.addf %9, %11 : vector<16x128xf32>
    %c0_11 = arith.constant 0 : index
    %c0_12 = arith.constant 0 : index
    %13 = vector.load %arg6[%c0_11, %c0_12] : memref<128x128xf32, #tpu.memory_space<vmem>>, vector<128x128xf32>
    %cst_13 = arith.constant dense<0.000000e+00> : vector<16x128xf32>
    %14 = tpu.matmul %12, %13, %cst_13 {dimension_numbers = #tpu.dot_dimension_numbers<[1], [0], [0], [1], [0, 0, 1, 1], [], []>} : vector<16x128xf32>, vector<128x128xf32>, vector<16x128xf32> -> vector<16x128xf32>
    %c0_14 = arith.constant 0 : index
    %c0_15 = arith.constant 0 : index
    %15 = vector.load %arg7[%c0_14, %c0_15] : memref<1x128xf32, #tpu.memory_space<vmem>>, vector<1x128xf32>
    %16 = vector.broadcast %15 : vector<1x128xf32> to vector<16x128xf32>
    %17 = arith.addf %14, %16 : vector<16x128xf32>
    %cst_16 = arith.constant 0.000000e+00 : f32
    %18 = vector.broadcast %cst_16 : f32 to vector<16x128xf32>
    %19 = arith.maximumf %17, %18 : vector<16x128xf32>
    %c0_17 = arith.constant 0 : index
    %c0_18 = arith.constant 0 : index
    %20 = vector.load %arg8[%c0_17, %c0_18] : memref<128x128xf32, #tpu.memory_space<vmem>>, vector<128x128xf32>
    %cst_19 = arith.constant dense<0.000000e+00> : vector<16x128xf32>
    %21 = tpu.matmul %19, %20, %cst_19 {dimension_numbers = #tpu.dot_dimension_numbers<[1], [0], [0], [1], [0, 0, 1, 1], [], []>} : vector<16x128xf32>, vector<128x128xf32>, vector<16x128xf32> -> vector<16x128xf32>
    %c0_20 = arith.constant 0 : index
    %c0_21 = arith.constant 0 : index
    %22 = vector.load %arg9[%c0_20, %c0_21] : memref<1x128xf32, #tpu.memory_space<vmem>>, vector<1x128xf32>
    %23 = vector.broadcast %22 : vector<1x128xf32> to vector<16x128xf32>
    %24 = arith.addf %21, %23 : vector<16x128xf32>
    %25 = arith.negf %24 : vector<16x128xf32>
    %26 = math.exp %25 : vector<16x128xf32>
    %cst_22 = arith.constant 1.000000e+00 : f32
    %27 = vector.broadcast %cst_22 : f32 to vector<16x128xf32>
    %28 = arith.addf %27, %26 : vector<16x128xf32>
    %29 = arith.divf %27, %28 : vector<16x128xf32>
    %c0_23 = arith.constant 0 : index
    %c0_24 = arith.constant 0 : index
    %30 = vector.load %arg10[%c0_23, %c0_24] : memref<16x128xf32, #tpu.memory_space<vmem>>, vector<16x128xf32>
    tpu.vector_store %arg10[%c0_23, %c0_24], %12 {strides = array<i32>} : memref<16x128xf32, #tpu.memory_space<vmem>>, vector<16x128xf32>,
    %c0_25 = arith.constant 0 : index
    %c0_26 = arith.constant 0 : index
    %31 = vector.load %arg11[%c0_25, %c0_26] : memref<16x128xf32, #tpu.memory_space<vmem>>, vector<16x128xf32>
    tpu.vector_store %arg11[%c0_25, %c0_26], %29 {strides = array<i32>} : memref<16x128xf32, #tpu.memory_space<vmem>>, vector<16x128xf32>,
    return
  }
  func.func @transform_0(%arg0: i32) -> (i32, i32) {
    %c0_i32 = arith.constant 0 : i32
    %c0_i32_0 = arith.constant 0 : i32
    return %arg0, %c0_i32 : i32, i32
  }
  func.func @transform_1(%arg0: i32) -> (i32, i32) {
    %c0_i32 = arith.constant 0 : i32
    %c0_i32_0 = arith.constant 0 : i32
    %c0_i32_1 = arith.constant 0 : i32
    return %c0_i32, %c0_i32_0 : i32, i32
  }
  func.func @transform_2(%arg0: i32) -> (i32, i32) {
    %c0_i32 = arith.constant 0 : i32
    %c0_i32_0 = arith.constant 0 : i32
    %c0_i32_1 = arith.constant 0 : i32
    return %c0_i32, %c0_i32_0 : i32, i32
  }
  func.func @transform_3(%arg0: i32) -> (i32, i32) {
    %c0_i32 = arith.constant 0 : i32
    %c0_i32_0 = arith.constant 0 : i32
    %c0_i32_1 = arith.constant 0 : i32
    return %c0_i32, %c0_i32_0 : i32, i32
  }
  func.func @transform_4(%arg0: i32) -> (i32, i32) {
    %c0_i32 = arith.constant 0 : i32
    %c0_i32_0 = arith.constant 0 : i32
    %c0_i32_1 = arith.constant 0 : i32
    return %c0_i32, %c0_i32_0 : i32, i32
  }
  func.func @transform_5(%arg0: i32) -> (i32, i32) {
    %c0_i32 = arith.constant 0 : i32
    %c0_i32_0 = arith.constant 0 : i32
    %c0_i32_1 = arith.constant 0 : i32
    return %c0_i32, %c0_i32_0 : i32, i32
  }
  func.func @transform_6(%arg0: i32) -> (i32, i32) {
    %c0_i32 = arith.constant 0 : i32
    %c0_i32_0 = arith.constant 0 : i32
    %c0_i32_1 = arith.constant 0 : i32
    return %c0_i32, %c0_i32_0 : i32, i32
  }
  func.func @transform_7(%arg0: i32) -> (i32, i32) {
    %c0_i32 = arith.constant 0 : i32
    %c0_i32_0 = arith.constant 0 : i32
    %c0_i32_1 = arith.constant 0 : i32
    return %c0_i32, %c0_i32_0 : i32, i32
  }
  func.func @transform_8(%arg0: i32) -> (i32, i32) {
    %c0_i32 = arith.constant 0 : i32
    %c0_i32_0 = arith.constant 0 : i32
    %c0_i32_1 = arith.constant 0 : i32
    return %c0_i32, %c0_i32_0 : i32, i32
  }
  func.func @transform_9(%arg0: i32) -> (i32, i32) {
    %c0_i32 = arith.constant 0 : i32
    %c0_i32_0 = arith.constant 0 : i32
    return %arg0, %c0_i32 : i32, i32
  }
  func.func @transform_10(%arg0: i32) -> (i32, i32) {
    %c0_i32 = arith.constant 0 : i32
    %c0_i32_0 = arith.constant 0 : i32
    return %arg0, %c0_i32 : i32, i32
  }
}

</mosaic_0001>

<llo_original>
// kernel: tpu_custom_call.1
$region0: #{tpu_custom_call.1}
  #allocation0 [shape = 'u32[]', space=smem, size = 0x4, offset = 0x4, fixed_abs, tag = 'smem constant byte address 0x4 - core index']
  #allocation1 [shape = 'u32[144,128]{1,0:T(1,128)}', space=vmem, size = 0x12000, scoped, tag = 'internal scratch']
  %s0 = inlined_call_operand.hbm [shape: f32[16,64], index: 0, kind: input, shape index: {}]
  %s1 = inlined_call_operand.hbm [shape: f32[64,128], index: 1, kind: input, shape index: {}]
  %s2 = inlined_call_operand.vmem [shape: f32[1,128], index: 2, kind: input, shape index: {}]
  %s3 = inlined_call_operand.hbm [shape: f32[128,128], index: 3, kind: input, shape index: {}]
  %s4 = inlined_call_operand.vmem [shape: f32[1,128], index: 4, kind: input, shape index: {}]
  %s5 = inlined_call_operand.hbm [shape: f32[128,128], index: 5, kind: input, shape index: {}]
  %s6 = inlined_call_operand.vmem [shape: f32[1,128], index: 6, kind: input, shape index: {}]
  %s7 = inlined_call_operand.hbm [shape: f32[128,128], index: 7, kind: input, shape index: {}]
  %s8 = inlined_call_operand.vmem [shape: f32[1,128], index: 8, kind: input, shape index: {}]
  %s9 = inlined_call_operand.hbm [shape: f32[16,128], index: 9, kind: output, shape index: {0}]
  %s10 = inlined_call_operand.hbm [shape: f32[16,128], index: 10, kind: output, shape index: {1}]
  %11 = xla_tuple %s9, %s10
  %s12 = sld [smem:[#allocation0]]
  $region74: #{tpu_custom_call.1} parent=0
    _
  %s14 = ssub.s32 1, %s12
  %s15 = scalar_select 0, %s14, %s12
  $region1: #{tpu_custom_call.1} parent=0
    #allocation2 [shape = 'u8[8192]{0}', space=vmem, size = 0x2000, scoped, tag = 'input window, operand 0, single buffered']
    #allocation3 [shape = 's32[1]{0}', space=sflag, size = 0x4, scoped, tag = 'scoped memory for tpu_custom_call.1']
    #allocation4 [shape = 's32[1]{0}', space=sflag, size = 0x4, scoped, tag = 'scoped memory for tpu_custom_call.1']
    #allocation5 [shape = 'u8[32768]{0}', space=vmem, size = 0x8000, scoped, tag = 'input window, operand 1, single buffered']
    #allocation6 [shape = 's32[1]{0}', space=sflag, size = 0x4, scoped, tag = 'scoped memory for tpu_custom_call.1']
    #allocation7 [shape = 'u8[65536]{0}', space=vmem, size = 0x10000, scoped, tag = 'input window, operand 3, single buffered']
    #allocation8 [shape = 'u8[65536]{0}', space=vmem, size = 0x10000, scoped, tag = 'input window, operand 5, single buffered']
    #allocation9 [shape = 's32[1]{0}', space=sflag, size = 0x4, scoped, tag = 'scoped memory for tpu_custom_call.1']
    #allocation10 [shape = 'u8[65536]{0}', space=vmem, size = 0x10000, scoped, tag = 'input window, operand 7, single buffered']
    #allocation11 [shape = 'u8[8192]{0}', space=vmem, size = 0x2000, scoped, tag = 'output window, operand 0, single buffered']
    #allocation12 [shape = 'u8[8192]{0}', space=vmem, size = 0x2000, scoped, tag = 'output window, operand 1, single buffered']
    #allocation13 [shape = 's32[1]{0}', space=sflag, size = 0x4, scoped, tag = 'scoped memory for tpu_custom_call.1']
    %16 = vsyncpa [#allocation3], 0
    %17 = vsyncpa [#allocation6], 0
    %18 = vsyncpa [#allocation9], 0
    %19 = vsyncpa [#allocation4], 0
    %20 = vsyncpa [#allocation13], 0
    // Predicated region
    $region2: #{tpu_custom_call.1} parent=1 // pred_check
      _
    $region3: #{tpu_custom_call.1} parent=1 // pred_check_branch
      %22 = sbr.rel (0) target = $region5
    $region4: #{tpu_custom_call.1} parent=1 // pred_region
      %s24 = ssub.s32 256, 256
      %25 = vsyncadd [#allocation3], %s24
      %s26 = sshll.u32 [#allocation2], 4
      %s27 = int_to_ptr.vmem [resolvable:$true] %s26
      %32 = dma.hbm_to_vmem [thread:$0]  %s0, 256, %s27, [#allocation3], 128, 128, 8
    $region5: #{tpu_custom_call.1} parent=1 // pred_fallthru
      _
    // Predicated region
    $region6: #{tpu_custom_call.1} parent=1 // pred_check
      _
    $region7: #{tpu_custom_call.1} parent=1 // pred_check_branch
      %34 = sbr.rel (0) target = $region9
    $region8: #{tpu_custom_call.1} parent=1 // pred_region
      %s36 = ssub.s32 1024, 1024
      %37 = vsyncadd [#allocation6], %s36
      %s38 = sshll.u32 [#allocation5], 4
      %s39 = int_to_ptr.vmem [resolvable:$true] %s38
      %44 = dma.hbm_to_vmem [thread:$0]  %s1, 1024, %s39, [#allocation6], 128, 128, 8
    $region9: #{tpu_custom_call.1} parent=1 // pred_fallthru
      _
    // Predicated region
    $region10: #{tpu_custom_call.1} parent=1 // pred_check
      _
    $region11: #{tpu_custom_call.1} parent=1 // pred_check_branch
      %46 = sbr.rel (0) target = $region13
    $region12: #{tpu_custom_call.1} parent=1 // pred_region
      _
    $region13: #{tpu_custom_call.1} parent=1 // pred_fallthru
      _
    // Predicated region
    $region14: #{tpu_custom_call.1} parent=1 // pred_check
      _
    $region15: #{tpu_custom_call.1} parent=1 // pred_check_branch
      %48 = sbr.rel (0) target = $region17
    $region16: #{tpu_custom_call.1} parent=1 // pred_region
      %s50 = ssub.s32 2048, 2048
      %51 = vsyncadd [#allocation6], %s50
      %s52 = sshll.u32 [#allocation7], 4
      %s53 = int_to_ptr.vmem [resolvable:$true] %s52
      %58 = dma.hbm_to_vmem [thread:$0]  %s3, 2048, %s53, [#allocation6], 128, 128, 8
    $region17: #{tpu_custom_call.1} parent=1 // pred_fallthru
      _
    // Predicated region
    $region18: #{tpu_custom_call.1} parent=1 // pred_check
      _
    $region19: #{tpu_custom_call.1} parent=1 // pred_check_branch
      %60 = sbr.rel (0) target = $region21
    $region20: #{tpu_custom_call.1} parent=1 // pred_region
      _
    $region21: #{tpu_custom_call.1} parent=1 // pred_fallthru
      _
    // Predicated region
    $region22: #{tpu_custom_call.1} parent=1 // pred_check
      _
    $region23: #{tpu_custom_call.1} parent=1 // pred_check_branch
      %62 = sbr.rel (0) target = $region25
    $region24: #{tpu_custom_call.1} parent=1 // pred_region
      %s64 = ssub.s32 2048, 2048
      %65 = vsyncadd [#allocation9], %s64
      %s66 = sshll.u32 [#allocation8], 4
      %s67 = int_to_ptr.vmem [resolvable:$true] %s66
      %72 = dma.hbm_to_vmem [thread:$0]  %s5, 2048, %s67, [#allocation9], 128, 128, 8
    $region25: #{tpu_custom_call.1} parent=1 // pred_fallthru
      _
    // Predicated region
    $region26: #{tpu_custom_call.1} parent=1 // pred_check
      _
    $region27: #{tpu_custom_call.1} parent=1 // pred_check_branch
      %74 = sbr.rel (0) target = $region29
    $region28: #{tpu_custom_call.1} parent=1 // pred_region
      _
    $region29: #{tpu_custom_call.1} parent=1 // pred_fallthru
      _
    // Predicated region
    $region30: #{tpu_custom_call.1} parent=1 // pred_check
      _
    $region31: #{tpu_custom_call.1} parent=1 // pred_check_branch
      %76 = sbr.rel (0) target = $region33
    $region32: #{tpu_custom_call.1} parent=1 // pred_region
      %s78 = ssub.s32 2048, 2048
      %79 = vsyncadd [#allocation9], %s78
      %s80 = sshll.u32 [#allocation10], 4
      %s81 = int_to_ptr.vmem [resolvable:$true] %s80
      %86 = dma.hbm_to_vmem [thread:$0]  %s7, 2048, %s81, [#allocation9], 128, 128, 8
    $region33: #{tpu_custom_call.1} parent=1 // pred_fallthru
      _
    // Predicated region
    $region34: #{tpu_custom_call.1} parent=1 // pred_check
      _
    $region35: #{tpu_custom_call.1} parent=1 // pred_check_branch
      %88 = sbr.rel (0) target = $region37
    $region36: #{tpu_custom_call.1} parent=1 // pred_region
      _
    $region37: #{tpu_custom_call.1} parent=1 // pred_fallthru
      _
    // Predicated region
    $region38: #{tpu_custom_call.1} parent=1 // pred_check
      _
    $region39: #{tpu_custom_call.1} parent=1 // pred_check_branch
      %90 = sbr.rel (0) target = $region41
    $region40: #{tpu_custom_call.1} parent=1 // pred_region
      %91 = dma.done [#allocation3], 256
    $region41: #{tpu_custom_call.1} parent=1 // pred_fallthru
      _
    // Predicated region
    $region42: #{tpu_custom_call.1} parent=1 // pred_check
      _
    $region43: #{tpu_custom_call.1} parent=1 // pred_check_branch
      %93 = sbr.rel (0) target = $region45
    $region44: #{tpu_custom_call.1} parent=1 // pred_region
      %94 = dma.done [#allocation6], 1024
    $region45: #{tpu_custom_call.1} parent=1 // pred_fallthru
      _
    // Predicated region
    $region46: #{tpu_custom_call.1} parent=1 // pred_check
      _
    $region47: #{tpu_custom_call.1} parent=1 // pred_check_branch
      %96 = sbr.rel (0) target = $region49
    $region48: #{tpu_custom_call.1} parent=1 // pred_region
      %97 = dma.done [#allocation6], 2048
    $region49: #{tpu_custom_call.1} parent=1 // pred_fallthru
      _
    // Predicated region
    $region50: #{tpu_custom_call.1} parent=1 // pred_check
      _
    $region51: #{tpu_custom_call.1} parent=1 // pred_check_branch
      %99 = sbr.rel (0) target = $region53
    $region52: #{tpu_custom_call.1} parent=1 // pred_region
      %100 = dma.done [#allocation9], 2048
    $region53: #{tpu_custom_call.1} parent=1 // pred_fallthru
      _
    // Predicated region
    $region54: #{tpu_custom_call.1} parent=1 // pred_check
      _
    $region55: #{tpu_custom_call.1} parent=1 // pred_check_branch
      %102 = sbr.rel (0) target = $region57
    $region56: #{tpu_custom_call.1} parent=1 // pred_region
      %103 = dma.done [#allocation9], 2048
    $region57: #{tpu_custom_call.1} parent=1 // pred_fallthru
      _
    %v104 = vld [vmem:[#allocation2] sm:$0xff]
    %v105 = vld [vmem:[#allocation2 + $0x8] sm:$0xff]
    %v106 = vld [vmem:[#allocation5] sm:$0xff]
    %v107 = vld [vmem:[#allocation5 + $0x8] sm:$0xff]
    %v108 = vld [vmem:[#allocation5 + $0x10] sm:$0xff]
    %v109 = vld [vmem:[#allocation5 + $0x18] sm:$0xff]
    %v110 = vld [vmem:[#allocation5 + $0x20] sm:$0xff]
    %v111 = vld [vmem:[#allocation5 + $0x28] sm:$0xff]
    %v112 = vld [vmem:[#allocation5 + $0x30] sm:$0xff]
    %v113 = vld [vmem:[#allocation5 + $0x38] sm:$0xff]
    %v114 = vld [vmem:[%s2] sm:$0x1]
    %v116 = vlaneseq
    %v117 = vshrl.u32 %v116, 7
    %v118 = vsub.s32 0, %v117
    %v119 = vrot.slane %v114, %v118
    %vm121 = vcmask 523264
    %v123 = vsel %vm121, %v104, 0
    %v126 = vsel %vm121, %v105, 0
    %128 = vmatprep.subr.mxu0 0.0
    %129 = vmatpush1.msra.mxu0 %v106
    %130 = vmatprep.subr.mxu0 0.0
    %131 = vmatpush1.msra.mxu0 %v107
    %132 = vmatprep.subr.mxu0 0.0
    %133 = vmatpush1.msra.mxu0 %v108
    %134 = vmatprep.subr.mxu0 0.0
    %135 = vmatpush1.msra.mxu0 %v109
    %136 = vmatprep.subr.mxu0 0.0
    %137 = vmatpush1.msra.mxu0 %v110
    %138 = vmatprep.subr.mxu0 0.0
    %139 = vmatpush1.msra.mxu0 %v111
    %140 = vmatprep.subr.mxu0 0.0
    %141 = vmatpush1.msra.mxu0 %v112
    %142 = vmatprep.subr.mxu0 0.0
    %143 = vmatpush1.msra.mxu0 %v113
    %144 = vmatprep.subr.mxu0 0.0
    %145 = vmatpush1.msra.mxu0 0.0
    %146 = vmatprep.subr.mxu0 0.0
    %147 = vmatpush1.msra.mxu0 0.0
    %148 = vmatprep.subr.mxu0 0.0
    %149 = vmatpush1.msra.mxu0 0.0
    %150 = vmatprep.subr.mxu0 0.0
    %151 = vmatpush1.msra.mxu0 0.0
    %152 = vmatprep.subr.mxu0 0.0
    %153 = vmatpush1.msra.mxu0 0.0
    %154 = vmatprep.subr.mxu0 0.0
    %155 = vmatpush1.msra.mxu0 0.0
    %156 = vmatprep.subr.mxu0 0.0
    %157 = vmatpush1.msra.mxu0 0.0
    %158 = vmatprep.subr.mxu0 0.0
    %159 = vmatpush1.msra.mxu0 0.0
    %160 = vmatprep.subr.mxu0 0.0
    %161 = vmatpush1.msra.mxu0 0.0
    %162 = vmatprep.subr.mxu0 0.0
    %163 = vmatpush1.msra.mxu0 0.0
    %164 = vmatprep.subr.mxu0 0.0
    %165 = vmatpush1.msra.mxu0 0.0
    %166 = vmatprep.subr.mxu0 0.0
    %167 = vmatpush1.msra.mxu0 0.0
    %168 = vmatprep.subr.mxu0 0.0
    %169 = vmatpush1.msra.mxu0 0.0
    %170 = vmatprep.subr.mxu0 0.0
    %171 = vmatpush1.msra.mxu0 0.0
    %172 = vmatprep.subr.mxu0 0.0
    %173 = vmatpush1.msra.mxu0 0.0
    %174 = vmatprep.subr.mxu0 0.0
    %175 = vmatpush1.msra.mxu0 0.0
    %176 = vmatprep.subr.mxu0 0.0
    %177 = vmatpush1.msra.mxu0 0.0
    %178 = vmatprep.subr.mxu0 0.0
    %179 = vmatpush1.msra.mxu0 0.0
    %180 = vmatprep.subr.mxu0 0.0
    %181 = vmatpush1.msra.mxu0 0.0
    %182 = vmatprep.subr.mxu0 0.0
    %183 = vmatpush1.msra.mxu0 0.0
    %184 = vmatprep.subr.mxu0 0.0
    %185 = vmatpush1.msra.mxu0 0.0
    %186 = vmatprep.subr.mxu0 0.0
    %187 = vmatpush1.msra.mxu0 0.0
    %188 = vmatprep.subr.mxu0 0.0
    %189 = vmatpush1.msra.mxu0 0.0
    %190 = vmatprep.subr.mxu0 0.0
    %191 = vmatpush1.msra.mxu0 0.0
    %192 = vmatprep.mubr.f32.mxu0 0.0
    %193 = vmatmul.mubr.f32.gmra.mrb[0].mxu0 %v123
    %v194 = vpop.f32.mrb[0].mxu0
    %v195 = vadd.f32 %v119, %v194
    %v196 = vpop.f32.mrb[0].mxu0
    %197 = vmatprep.mubr.f32.mxu0 0.0
    %198 = vmatmul.mubr.f32.gmra.mrb[0].mxu0 %v126
    %v199 = vpop.f32.mrb[0].mxu0
    %v200 = vadd.f32 %v119, %v199
    %v201 = vpop.f32.mrb[0].mxu0
    %202 = vdwg.mxu0
    %v203 = vmax.f32 %v195, 0.0
    %v204 = vmax.f32 %v200, 0.0
    %v205 = vld [vmem:[#allocation7] sm:$0xff]
    %v206 = vld [vmem:[#allocation7 + $0x8] sm:$0xff]
    %v207 = vld [vmem:[#allocation7 + $0x10] sm:$0xff]
    %v208 = vld [vmem:[#allocation7 + $0x18] sm:$0xff]
    %v209 = vld [vmem:[#allocation7 + $0x20] sm:$0xff]
    %v210 = vld [vmem:[#allocation7 + $0x28] sm:$0xff]
    %v211 = vld [vmem:[#allocation7 + $0x30] sm:$0xff]
    %v212 = vld [vmem:[#allocation7 + $0x38] sm:$0xff]
    %v213 = vld [vmem:[#allocation7 + $0x40] sm:$0xff]
    %v214 = vld [vmem:[#allocation7 + $0x48] sm:$0xff]
    %v215 = vld [vmem:[#allocation7 + $0x50] sm:$0xff]
    %v216 = vld [vmem:[#allocation7 + $0x58] sm:$0xff]
    %v217 = vld [vmem:[#allocation7 + $0x60] sm:$0xff]
    %v218 = vld [vmem:[#allocation7 + $0x68] sm:$0xff]
    %v219 = vld [vmem:[#allocation7 + $0x70] sm:$0xff]
    %v220 = vld [vmem:[#allocation7 + $0x78] sm:$0xff]
    %v221 = vld [vmem:[%s4] sm:$0x1]
    %v223 = vlaneseq
    %v224 = vshrl.u32 %v223, 7
    %v225 = vsub.s32 0, %v224
    %v226 = vrot.slane %v221, %v225
    %228 = vmatprep.subr.mxu0 0.0
    %229 = vmatpush1.msra.mxu0 %v205
    %230 = vmatprep.subr.mxu0 0.0
    %231 = vmatpush1.msra.mxu0 %v206
    %232 = vmatprep.subr.mxu0 0.0
    %233 = vmatpush1.msra.mxu0 %v207
    %234 = vmatprep.subr.mxu0 0.0
    %235 = vmatpush1.msra.mxu0 %v208
    %236 = vmatprep.subr.mxu0 0.0
    %237 = vmatpush1.msra.mxu0 %v209
    %238 = vmatprep.subr.mxu0 0.0
    %239 = vmatpush1.msra.mxu0 %v210
    %240 = vmatprep.subr.mxu0 0.0
    %241 = vmatpush1.msra.mxu0 %v211
    %242 = vmatprep.subr.mxu0 0.0
    %243 = vmatpush1.msra.mxu0 %v212
    %244 = vmatprep.subr.mxu0 0.0
    %245 = vmatpush1.msra.mxu0 %v213
    %246 = vmatprep.subr.mxu0 0.0
    %247 = vmatpush1.msra.mxu0 %v214
    %248 = vmatprep.subr.mxu0 0.0
    %249 = vmatpush1.msra.mxu0 %v215
    %250 = vmatprep.subr.mxu0 0.0
    %251 = vmatpush1.msra.mxu0 %v216
    %252 = vmatprep.subr.mxu0 0.0
    %253 = vmatpush1.msra.mxu0 %v217
    %254 = vmatprep.subr.mxu0 0.0
    %255 = vmatpush1.msra.mxu0 %v218
    %256 = vmatprep.subr.mxu0 0.0
    %257 = vmatpush1.msra.mxu0 %v219
    %258 = vmatprep.subr.mxu0 0.0
    %259 = vmatpush1.msra.mxu0 %v220
    %260 = vmatprep.subr.mxu0 0.0
    %261 = vmatpush1.msra.mxu0 0.0
    %262 = vmatprep.subr.mxu0 0.0
    %263 = vmatpush1.msra.mxu0 0.0
    %264 = vmatprep.subr.mxu0 0.0
    %265 = vmatpush1.msra.mxu0 0.0
    %266 = vmatprep.subr.mxu0 0.0
    %267 = vmatpush1.msra.mxu0 0.0
    %268 = vmatprep.subr.mxu0 0.0
    %269 = vmatpush1.msra.mxu0 0.0
    %270 = vmatprep.subr.mxu0 0.0
    %271 = vmatpush1.msra.mxu0 0.0
    %272 = vmatprep.subr.mxu0 0.0
    %273 = vmatpush1.msra.mxu0 0.0
    %274 = vmatprep.subr.mxu0 0.0
    %275 = vmatpush1.msra.mxu0 0.0
    %276 = vmatprep.subr.mxu0 0.0
    %277 = vmatpush1.msra.mxu0 0.0
    %278 = vmatprep.subr.mxu0 0.0
    %279 = vmatpush1.msra.mxu0 0.0
    %280 = vmatprep.subr.mxu0 0.0
    %281 = vmatpush1.msra.mxu0 0.0
    %282 = vmatprep.subr.mxu0 0.0
    %283 = vmatpush1.msra.mxu0 0.0
    %284 = vmatprep.subr.mxu0 0.0
    %285 = vmatpush1.msra.mxu0 0.0
    %286 = vmatprep.subr.mxu0 0.0
    %287 = vmatpush1.msra.mxu0 0.0
    %288 = vmatprep.subr.mxu0 0.0
    %289 = vmatpush1.msra.mxu0 0.0
    %290 = vmatprep.subr.mxu0 0.0
    %291 = vmatpush1.msra.mxu0 0.0
    %292 = vmatprep.mubr.f32.mxu0 0.0
    %293 = vmatmul.mubr.f32.gmra.mrb[0].mxu0 %v203
    %v294 = vpop.f32.mrb[0].mxu0
    %v295 = vadd.f32 %v226, %v294
    %v296 = vpop.f32.mrb[0].mxu0
    %297 = vmatprep.mubr.f32.mxu0 0.0
    %298 = vmatmul.mubr.f32.gmra.mrb[0].mxu0 %v204
    %v299 = vpop.f32.mrb[0].mxu0
    %v300 = vadd.f32 %v226, %v299
    %v301 = vpop.f32.mrb[0].mxu0
    %302 = vdwg.mxu0
    %v303 = vld [vmem:[#allocation8] sm:$0xff]
    %v304 = vld [vmem:[#allocation8 + $0x8] sm:$0xff]
    %v305 = vld [vmem:[#allocation8 + $0x10] sm:$0xff]
    %v306 = vld [vmem:[#allocation8 + $0x18] sm:$0xff]
    %v307 = vld [vmem:[#allocation8 + $0x20] sm:$0xff]
    %v308 = vld [vmem:[#allocation8 + $0x28] sm:$0xff]
    %v309 = vld [vmem:[#allocation8 + $0x30] sm:$0xff]
    %v310 = vld [vmem:[#allocation8 + $0x38] sm:$0xff]
    %v311 = vld [vmem:[#allocation8 + $0x40] sm:$0xff]
    %v312 = vld [vmem:[#allocation8 + $0x48] sm:$0xff]
    %v313 = vld [vmem:[#allocation8 + $0x50] sm:$0xff]
    %v314 = vld [vmem:[#allocation8 + $0x58] sm:$0xff]
    %v315 = vld [vmem:[#allocation8 + $0x60] sm:$0xff]
    %v316 = vld [vmem:[#allocation8 + $0x68] sm:$0xff]
    %v317 = vld [vmem:[#allocation8 + $0x70] sm:$0xff]
    %v318 = vld [vmem:[#allocation8 + $0x78] sm:$0xff]
    %v319 = vld [vmem:[%s6] sm:$0x1]
    %v321 = vlaneseq
    %v322 = vshrl.u32 %v321, 7
    %v323 = vsub.s32 0, %v322
    %v324 = vrot.slane %v319, %v323
    %326 = vmatprep.subr.mxu0 0.0
    %327 = vmatpush1.msra.mxu0 %v303
    %328 = vmatprep.subr.mxu0 0.0
    %329 = vmatpush1.msra.mxu0 %v304
    %330 = vmatprep.subr.mxu0 0.0
    %331 = vmatpush1.msra.mxu0 %v305
    %332 = vmatprep.subr.mxu0 0.0
    %333 = vmatpush1.msra.mxu0 %v306
    %334 = vmatprep.subr.mxu0 0.0
    %335 = vmatpush1.msra.mxu0 %v307
    %336 = vmatprep.subr.mxu0 0.0
    %337 = vmatpush1.msra.mxu0 %v308
    %338 = vmatprep.subr.mxu0 0.0
    %339 = vmatpush1.msra.mxu0 %v309
    %340 = vmatprep.subr.mxu0 0.0
    %341 = vmatpush1.msra.mxu0 %v310
    %342 = vmatprep.subr.mxu0 0.0
    %343 = vmatpush1.msra.mxu0 %v311
    %344 = vmatprep.subr.mxu0 0.0
    %345 = vmatpush1.msra.mxu0 %v312
    %346 = vmatprep.subr.mxu0 0.0
    %347 = vmatpush1.msra.mxu0 %v313
    %348 = vmatprep.subr.mxu0 0.0
    %349 = vmatpush1.msra.mxu0 %v314
    %350 = vmatprep.subr.mxu0 0.0
    %351 = vmatpush1.msra.mxu0 %v315
    %352 = vmatprep.subr.mxu0 0.0
    %353 = vmatpush1.msra.mxu0 %v316
    %354 = vmatprep.subr.mxu0 0.0
    %355 = vmatpush1.msra.mxu0 %v317
    %356 = vmatprep.subr.mxu0 0.0
    %357 = vmatpush1.msra.mxu0 %v318
    %358 = vmatprep.subr.mxu0 0.0
    %359 = vmatpush1.msra.mxu0 0.0
    %360 = vmatprep.subr.mxu0 0.0
    %361 = vmatpush1.msra.mxu0 0.0
    %362 = vmatprep.subr.mxu0 0.0
    %363 = vmatpush1.msra.mxu0 0.0
    %364 = vmatprep.subr.mxu0 0.0
    %365 = vmatpush1.msra.mxu0 0.0
    %366 = vmatprep.subr.mxu0 0.0
    %367 = vmatpush1.msra.mxu0 0.0
    %368 = vmatprep.subr.mxu0 0.0
    %369 = vmatpush1.msra.mxu0 0.0
    %370 = vmatprep.subr.mxu0 0.0
    %371 = vmatpush1.msra.mxu0 0.0
    %372 = vmatprep.subr.mxu0 0.0
    %373 = vmatpush1.msra.mxu0 0.0
    %374 = vmatprep.subr.mxu0 0.0
    %375 = vmatpush1.msra.mxu0 0.0
    %376 = vmatprep.subr.mxu0 0.0
    %377 = vmatpush1.msra.mxu0 0.0
    %378 = vmatprep.subr.mxu0 0.0
    %379 = vmatpush1.msra.mxu0 0.0
    %380 = vmatprep.subr.mxu0 0.0
    %381 = vmatpush1.msra.mxu0 0.0
    %382 = vmatprep.subr.mxu0 0.0
    %383 = vmatpush1.msra.mxu0 0.0
    %384 = vmatprep.subr.mxu0 0.0
    %385 = vmatpush1.msra.mxu0 0.0
    %386 = vmatprep.subr.mxu0 0.0
    %387 = vmatpush1.msra.mxu0 0.0
    %388 = vmatprep.subr.mxu0 0.0
    %389 = vmatpush1.msra.mxu0 0.0
    %390 = vmatprep.mubr.f32.mxu0 0.0
    %391 = vmatmul.mubr.f32.gmra.mrb[0].mxu0 %v295
    %v392 = vpop.f32.mrb[0].mxu0
    %v393 = vadd.f32 %v324, %v392
    %v394 = vpop.f32.mrb[0].mxu0
    %395 = vmatprep.mubr.f32.mxu0 0.0
    %396 = vmatmul.mubr.f32.gmra.mrb[0].mxu0 %v300
    %v397 = vpop.f32.mrb[0].mxu0
    %v398 = vadd.f32 %v324, %v397
    %v399 = vpop.f32.mrb[0].mxu0
    %400 = vdwg.mxu0
    %v401 = vmax.f32 %v393, 0.0
    %v402 = vmax.f32 %v398, 0.0
    %v403 = vld [vmem:[#allocation10] sm:$0xff]
    %v404 = vld [vmem:[#allocation10 + $0x8] sm:$0xff]
    %v405 = vld [vmem:[#allocation10 + $0x10] sm:$0xff]
    %v406 = vld [vmem:[#allocation10 + $0x18] sm:$0xff]
    %v407 = vld [vmem:[#allocation10 + $0x20] sm:$0xff]
    %v408 = vld [vmem:[#allocation10 + $0x28] sm:$0xff]
    %v409 = vld [vmem:[#allocation10 + $0x30] sm:$0xff]
    %v410 = vld [vmem:[#allocation10 + $0x38] sm:$0xff]
    %v411 = vld [vmem:[#allocation10 + $0x40] sm:$0xff]
    %v412 = vld [vmem:[#allocation10 + $0x48] sm:$0xff]
    %v413 = vld [vmem:[#allocation10 + $0x50] sm:$0xff]
    %v414 = vld [vmem:[#allocation10 + $0x58] sm:$0xff]
    %v415 = vld [vmem:[#allocation10 + $0x60] sm:$0xff]
    %v416 = vld [vmem:[#allocation10 + $0x68] sm:$0xff]
    %v417 = vld [vmem:[#allocation10 + $0x70] sm:$0xff]
    %v418 = vld [vmem:[#allocation10 + $0x78] sm:$0xff]
    %v419 = vld [vmem:[%s8] sm:$0x1]
    %v421 = vlaneseq
    %v422 = vshrl.u32 %v421, 7
    %v423 = vsub.s32 0, %v422
    %v424 = vrot.slane %v419, %v423
    %426 = vmatprep.subr.mxu0 0.0
    %427 = vmatpush1.msra.mxu0 %v403
    %428 = vmatprep.subr.mxu0 0.0
    %429 = vmatpush1.msra.mxu0 %v404
    %430 = vmatprep.subr.mxu0 0.0
    %431 = vmatpush1.msra.mxu0 %v405
    %432 = vmatprep.subr.mxu0 0.0
    %433 = vmatpush1.msra.mxu0 %v406
    %434 = vmatprep.subr.mxu0 0.0
    %435 = vmatpush1.msra.mxu0 %v407
    %436 = vmatprep.subr.mxu0 0.0
    %437 = vmatpush1.msra.mxu0 %v408
    %438 = vmatprep.subr.mxu0 0.0
    %439 = vmatpush1.msra.mxu0 %v409
    %440 = vmatprep.subr.mxu0 0.0
    %441 = vmatpush1.msra.mxu0 %v410
    %442 = vmatprep.subr.mxu0 0.0
    %443 = vmatpush1.msra.mxu0 %v411
    %444 = vmatprep.subr.mxu0 0.0
    %445 = vmatpush1.msra.mxu0 %v412
    %446 = vmatprep.subr.mxu0 0.0
    %447 = vmatpush1.msra.mxu0 %v413
    %448 = vmatprep.subr.mxu0 0.0
    %449 = vmatpush1.msra.mxu0 %v414
    %450 = vmatprep.subr.mxu0 0.0
    %451 = vmatpush1.msra.mxu0 %v415
    %452 = vmatprep.subr.mxu0 0.0
    %453 = vmatpush1.msra.mxu0 %v416
    %454 = vmatprep.subr.mxu0 0.0
    %455 = vmatpush1.msra.mxu0 %v417
    %456 = vmatprep.subr.mxu0 0.0
    %457 = vmatpush1.msra.mxu0 %v418
    %458 = vmatprep.subr.mxu0 0.0
    %459 = vmatpush1.msra.mxu0 0.0
    %460 = vmatprep.subr.mxu0 0.0
    %461 = vmatpush1.msra.mxu0 0.0
    %462 = vmatprep.subr.mxu0 0.0
    %463 = vmatpush1.msra.mxu0 0.0
    %464 = vmatprep.subr.mxu0 0.0
    %465 = vmatpush1.msra.mxu0 0.0
    %466 = vmatprep.subr.mxu0 0.0
    %467 = vmatpush1.msra.mxu0 0.0
    %468 = vmatprep.subr.mxu0 0.0
    %469 = vmatpush1.msra.mxu0 0.0
    %470 = vmatprep.subr.mxu0 0.0
    %471 = vmatpush1.msra.mxu0 0.0
    %472 = vmatprep.subr.mxu0 0.0
    %473 = vmatpush1.msra.mxu0 0.0
    %474 = vmatprep.subr.mxu0 0.0
    %475 = vmatpush1.msra.mxu0 0.0
    %476 = vmatprep.subr.mxu0 0.0
    %477 = vmatpush1.msra.mxu0 0.0
    %478 = vmatprep.subr.mxu0 0.0
    %479 = vmatpush1.msra.mxu0 0.0
    %480 = vmatprep.subr.mxu0 0.0
    %481 = vmatpush1.msra.mxu0 0.0
    %482 = vmatprep.subr.mxu0 0.0
    %483 = vmatpush1.msra.mxu0 0.0
    %484 = vmatprep.subr.mxu0 0.0
    %485 = vmatpush1.msra.mxu0 0.0
    %486 = vmatprep.subr.mxu0 0.0
    %487 = vmatpush1.msra.mxu0 0.0
    %488 = vmatprep.subr.mxu0 0.0
    %489 = vmatpush1.msra.mxu0 0.0
    %490 = vmatprep.mubr.f32.mxu0 0.0
    %491 = vmatmul.mubr.f32.gmra.mrb[0].mxu0 %v401
    %v492 = vpop.f32.mrb[0].mxu0
    %v493 = vadd.f32 %v424, %v492
    %v494 = vpop.f32.mrb[0].mxu0
    %495 = vmatprep.mubr.f32.mxu0 0.0
    %496 = vmatmul.mubr.f32.gmra.mrb[0].mxu0 %v402
    %v497 = vpop.f32.mrb[0].mxu0
    %v498 = vadd.f32 %v424, %v497
    %v499 = vpop.f32.mrb[0].mxu0
    %500 = vdwg.mxu0
    %v501 = vxor.u32 %v493, 2147483648
    %v502 = vxor.u32 %v498, 2147483648
    %v503 = vmul.f32 %v501, 1.442695
    %v504 = vpow.pop %v503
    %v505 = vmul.f32 %v502, 1.442695
    %v506 = vpow.pop %v505
    %v507 = vadd.f32 %v504, 1.0
    %v508 = vadd.f32 %v506, 1.0
    %v509 = vrcp.pop %v507
    %v510 = vmul.f32 1.0, %v509
    %v511 = vrcp.pop %v508
    %v512 = vmul.f32 1.0, %v511
    %513 = vst [vmem:[#allocation11] sm:$0xff] %v295
    %514 = vst [vmem:[#allocation11 + $0x8] sm:$0xff] %v300
    %515 = vst [vmem:[#allocation12] sm:$0xff] %v510
    %516 = vst [vmem:[#allocation12 + $0x8] sm:$0xff] %v512
    // Predicated region
    $region58: #{tpu_custom_call.1} parent=1 // pred_check
      _
    $region59: #{tpu_custom_call.1} parent=1 // pred_check_branch
      %518 = sbr.rel (0) target = $region61
    $region60: #{tpu_custom_call.1} parent=1 // pred_region
      %s520 = ssub.s32 256, 256
      %521 = vsyncadd [#allocation4], %s520
      %s522 = sshll.u32 [#allocation11], 4
      %s523 = int_to_ptr.vmem [resolvable:$true] %s522
      %528 = dma.vmem_to_hbm [thread:$0]  %s523, 256, %s9, [#allocation4], 128, 128, 8
    $region61: #{tpu_custom_call.1} parent=1 // pred_fallthru
      _
    // Predicated region
    $region62: #{tpu_custom_call.1} parent=1 // pred_check
      _
    $region63: #{tpu_custom_call.1} parent=1 // pred_check_branch
      %530 = sbr.rel (0) target = $region65
    $region64: #{tpu_custom_call.1} parent=1 // pred_region
      %s532 = ssub.s32 256, 256
      %533 = vsyncadd [#allocation13], %s532
      %s534 = sshll.u32 [#allocation12], 4
      %s535 = int_to_ptr.vmem [resolvable:$true] %s534
      %540 = dma.vmem_to_hbm [thread:$0]  %s535, 256, %s10, [#allocation13], 128, 128, 8
    $region65: #{tpu_custom_call.1} parent=1 // pred_fallthru
      _
    // Predicated region
    $region66: #{tpu_custom_call.1} parent=1 // pred_check
      _
    $region67: #{tpu_custom_call.1} parent=1 // pred_check_branch
      %542 = sbr.rel (0) target = $region69
    $region68: #{tpu_custom_call.1} parent=1 // pred_region
      %543 = dma.done [#allocation4], 256
    $region69: #{tpu_custom_call.1} parent=1 // pred_fallthru
      _
    // Predicated region
    $region70: #{tpu_custom_call.1} parent=1 // pred_check
      _
    $region71: #{tpu_custom_call.1} parent=1 // pred_check_branch
      %545 = sbr.rel (0) target = $region73
    $region72: #{tpu_custom_call.1} parent=1 // pred_region
      %546 = dma.done [#allocation13], 256
    $region73: #{tpu_custom_call.1} parent=1 // pred_fallthru
      _
    %547 = vsyncpa [#allocation3], 1
    %548 = vsyncpa [#allocation6], 1
    %549 = vsyncpa [#allocation9], 1
    %550 = vsyncpa [#allocation4], 1
    %551 = vsyncpa [#allocation13], 1

// kernel: tpu_custom_call.1
$region0: #{tpu_custom_call.1}
  #allocation0 [shape = 'u32[]', space=smem, size = 0x4, offset = 0x4, fixed_abs, tag = 'smem constant byte address 0x4 - core index']
  #allocation1 [shape = 'u32[144,128]{1,0:T(1,128)}', space=vmem, size = 0x12000, scoped, tag = 'internal scratch']
  %s0 = inlined_call_operand.hbm [shape: f32[16,64], index: 0, kind: input, shape index: {}]
  %s1 = inlined_call_operand.hbm [shape: f32[64,128], index: 1, kind: input, shape index: {}]
  %s2 = inlined_call_operand.vmem [shape: f32[1,128], index: 2, kind: input, shape index: {}]
  %s3 = inlined_call_operand.hbm [shape: f32[128,128], index: 3, kind: input, shape index: {}]
  %s4 = inlined_call_operand.vmem [shape: f32[1,128], index: 4, kind: input, shape index: {}]
  %s5 = inlined_call_operand.hbm [shape: f32[128,128], index: 5, kind: input, shape index: {}]
  %s6 = inlined_call_operand.vmem [shape: f32[1,128], index: 6, kind: input, shape index: {}]
  %s7 = inlined_call_operand.hbm [shape: f32[128,128], index: 7, kind: input, shape index: {}]
  %s8 = inlined_call_operand.vmem [shape: f32[1,128], index: 8, kind: input, shape index: {}]
  %s9 = inlined_call_operand.hbm [shape: f32[16,128], index: 9, kind: output, shape index: {0}]
  %s10 = inlined_call_operand.hbm [shape: f32[16,128], index: 10, kind: output, shape index: {1}]
  %11 = xla_tuple %s9, %s10
  %s12 = sld [smem:[#allocation0]]
  $region74: #{tpu_custom_call.1} parent=0
    _
  %s14 = ssub.s32 1, %s12
  %s15 = scalar_select 0, %s14, %s12
  $region1: #{tpu_custom_call.1} parent=0
    #allocation2 [shape = 'u8[8192]{0}', space=vmem, size = 0x2000, scoped, tag = 'input window, operand 0, single buffered']
    #allocation3 [shape = 's32[1]{0}', space=sflag, size = 0x4, scoped, tag = 'scoped memory for tpu_custom_call.1']
    #allocation4 [shape = 's32[1]{0}', space=sflag, size = 0x4, scoped, tag = 'scoped memory for tpu_custom_call.1']
    #allocation5 [shape = 'u8[32768]{0}', space=vmem, size = 0x8000, scoped, tag = 'input window, operand 1, single buffered']
    #allocation6 [shape = 's32[1]{0}', space=sflag, size = 0x4, scoped, tag = 'scoped memory for tpu_custom_call.1']
    #allocation7 [shape = 'u8[65536]{0}', space=vmem, size = 0x10000, scoped, tag = 'input window, operand 3, single buffered']
    #allocation8 [shape = 'u8[65536]{0}', space=vmem, size = 0x10000, scoped, tag = 'input window, operand 5, single buffered']
    #allocation9 [shape = 's32[1]{0}', space=sflag, size = 0x4, scoped, tag = 'scoped memory for tpu_custom_call.1']
    #allocation10 [shape = 'u8[65536]{0}', space=vmem, size = 0x10000, scoped, tag = 'input window, operand 7, single buffered']
    #allocation11 [shape = 'u8[8192]{0}', space=vmem, size = 0x2000, scoped, tag = 'output window, operand 0, single buffered']
    #allocation12 [shape = 'u8[8192]{0}', space=vmem, size = 0x2000, scoped, tag = 'output window, operand 1, single buffered']
    #allocation13 [shape = 's32[1]{0}', space=sflag, size = 0x4, scoped, tag = 'scoped memory for tpu_custom_call.1']
    %16 = vsyncpa [#allocation3], 0
    %17 = vsyncpa [#allocation6], 0
    %18 = vsyncpa [#allocation9], 0
    %19 = vsyncpa [#allocation4], 0
    %20 = vsyncpa [#allocation13], 0
    // Predicated region
    $region2: #{tpu_custom_call.1} parent=1 // pred_check
      _
    $region3: #{tpu_custom_call.1} parent=1 // pred_check_branch
      %22 = sbr.rel (0) target = $region5
    $region4: #{tpu_custom_call.1} parent=1 // pred_region
      %s24 = ssub.s32 256, 256
      %25 = vsyncadd [#allocation3], %s24
      %s26 = sshll.u32 [#allocation2], 4
      %s27 = int_to_ptr.vmem [resolvable:$true] %s26
      %32 = dma.hbm_to_vmem [thread:$0]  %s0, 256, %s27, [#allocation3], 128, 128, 8
    $region5: #{tpu_custom_call.1} parent=1 // pred_fallthru
      _
    // Predicated region
    $region6: #{tpu_custom_call.1} parent=1 // pred_check
      _
    $region7: #{tpu_custom_call.1} parent=1 // pred_check_branch
      %34 = sbr.rel (0) target = $region9
    $region8: #{tpu_custom_call.1} parent=1 // pred_region
      %s36 = ssub.s32 1024, 1024
      %37 = vsyncadd [#allocation6], %s36
      %s38 = sshll.u32 [#allocation5], 4
      %s39 = int_to_ptr.vmem [resolvable:$true] %s38
      %44 = dma.hbm_to_vmem [thread:$0]  %s1, 1024, %s39, [#allocation6], 128, 128, 8
    $region9: #{tpu_custom_call.1} parent=1 // pred_fallthru
      _
    // Predicated region
    $region10: #{tpu_custom_call.1} parent=1 // pred_check
      _
    $region11: #{tpu_custom_call.1} parent=1 // pred_check_branch
      %46 = sbr.rel (0) target = $region13
    $region12: #{tpu_custom_call.1} parent=1 // pred_region
      _
    $region13: #{tpu_custom_call.1} parent=1 // pred_fallthru
      _
    // Predicated region
    $region14: #{tpu_custom_call.1} parent=1 // pred_check
      _
    $region15: #{tpu_custom_call.1} parent=1 // pred_check_branch
      %48 = sbr.rel (0) target = $region17
    $region16: #{tpu_custom_call.1} parent=1 // pred_region
      %s50 = ssub.s32 2048, 2048
      %51 = vsyncadd [#allocation6], %s50
      %s52 = sshll.u32 [#allocation7], 4
      %s53 = int_to_ptr.vmem [resolvable:$true] %s52
      %58 = dma.hbm_to_vmem [thread:$0]  %s3, 2048, %s53, [#allocation6], 128, 128, 8
    $region17: #{tpu_custom_call.1} parent=1 // pred_fallthru
      _
    // Predicated region
    $region18: #{tpu_custom_call.1} parent=1 // pred_check
      _
    $region19: #{tpu_custom_call.1} parent=1 // pred_check_branch
      %60 = sbr.rel (0) target = $region21
    $region20: #{tpu_custom_call.1} parent=1 // pred_region
      _
    $region21: #{tpu_custom_call.1} parent=1 // pred_fallthru
      _
    // Predicated region
    $region22: #{tpu_custom_call.1} parent=1 // pred_check
      _
    $region23: #{tpu_custom_call.1} parent=1 // pred_check_branch
      %62 = sbr.rel (0) target = $region25
    $region24: #{tpu_custom_call.1} parent=1 // pred_region
      %s64 = ssub.s32 2048, 2048
      %65 = vsyncadd [#allocation9], %s64
      %s66 = sshll.u32 [#allocation8], 4
      %s67 = int_to_ptr.vmem [resolvable:$true] %s66
      %72 = dma.hbm_to_vmem [thread:$0]  %s5, 2048, %s67, [#allocation9], 128, 128, 8
    $region25: #{tpu_custom_call.1} parent=1 // pred_fallthru
      _
    // Predicated region
    $region26: #{tpu_custom_call.1} parent=1 // pred_check
      _
    $region27: #{tpu_custom_call.1} parent=1 // pred_check_branch
      %74 = sbr.rel (0) target = $region29
    $region28: #{tpu_custom_call.1} parent=1 // pred_region
      _
    $region29: #{tpu_custom_call.1} parent=1 // pred_fallthru
      _
    // Predicated region
    $region30: #{tpu_custom_call.1} parent=1 // pred_check
      _
    $region31: #{tpu_custom_call.1} parent=1 // pred_check_branch
      %76 = sbr.rel (0) target = $region33
    $region32: #{tpu_custom_call.1} parent=1 // pred_region
      %s78 = ssub.s32 2048, 2048
      %79 = vsyncadd [#allocation9], %s78
      %s80 = sshll.u32 [#allocation10], 4
      %s81 = int_to_ptr.vmem [resolvable:$true] %s80
      %86 = dma.hbm_to_vmem [thread:$0]  %s7, 2048, %s81, [#allocation9], 128, 128, 8
    $region33: #{tpu_custom_call.1} parent=1 // pred_fallthru
      _
    // Predicated region
    $region34: #{tpu_custom_call.1} parent=1 // pred_check
      _
    $region35: #{tpu_custom_call.1} parent=1 // pred_check_branch
      %88 = sbr.rel (0) target = $region37
    $region36: #{tpu_custom_call.1} parent=1 // pred_region
      _
    $region37: #{tpu_custom_call.1} parent=1 // pred_fallthru
      _
    // Predicated region
    $region38: #{tpu_custom_call.1} parent=1 // pred_check
      _
    $region39: #{tpu_custom_call.1} parent=1 // pred_check_branch
      %90 = sbr.rel (0) target = $region41
    $region40: #{tpu_custom_call.1} parent=1 // pred_region
      %91 = dma.done [#allocation3], 256
    $region41: #{tpu_custom_call.1} parent=1 // pred_fallthru
      _
    // Predicated region
    $region42: #{tpu_custom_call.1} parent=1 // pred_check
      _
    $region43: #{tpu_custom_call.1} parent=1 // pred_check_branch
      %93 = sbr.rel (0) target = $region45
    $region44: #{tpu_custom_call.1} parent=1 // pred_region
      %94 = dma.done [#allocation6], 1024
    $region45: #{tpu_custom_call.1} parent=1 // pred_fallthru
      _
    // Predicated region
    $region46: #{tpu_custom_call.1} parent=1 // pred_check
      _
    $region47: #{tpu_custom_call.1} parent=1 // pred_check_branch
      %96 = sbr.rel (0) target = $region49
    $region48: #{tpu_custom_call.1} parent=1 // pred_region
      %97 = dma.done [#allocation6], 2048
    $region49: #{tpu_custom_call.1} parent=1 // pred_fallthru
      _
    // Predicated region
    $region50: #{tpu_custom_call.1} parent=1 // pred_check
      _
    $region51: #{tpu_custom_call.1} parent=1 // pred_check_branch
      %99 = sbr.rel (0) target = $region53
    $region52: #{tpu_custom_call.1} parent=1 // pred_region
      %100 = dma.done [#allocation9], 2048
    $region53: #{tpu_custom_call.1} parent=1 // pred_fallthru
      _
    // Predicated region
    $region54: #{tpu_custom_call.1} parent=1 // pred_check
      _
    $region55: #{tpu_custom_call.1} parent=1 // pred_check_branch
      %102 = sbr.rel (0) target = $region57
    $region56: #{tpu_custom_call.1} parent=1 // pred_region
      %103 = dma.done [#allocation9], 2048
    $region57: #{tpu_custom_call.1} parent=1 // pred_fallthru
      _
    %v104 = vld [vmem:[#allocation2] sm:$0xff]
    %v105 = vld [vmem:[#allocation2 + $0x8] sm:$0xff]
    %v106 = vld [vmem:[#allocation5] sm:$0xff]
    %v107 = vld [vmem:[#allocation5 + $0x8] sm:$0xff]
    %v108 = vld [vmem:[#allocation5 + $0x10] sm:$0xff]
    %v109 = vld [vmem:[#allocation5 + $0x18] sm:$0xff]
    %v110 = vld [vmem:[#allocation5 + $0x20] sm:$0xff]
    %v111 = vld [vmem:[#allocation5 + $0x28] sm:$0xff]
    %v112 = vld [vmem:[#allocation5 + $0x30] sm:$0xff]
    %v113 = vld [vmem:[#allocation5 + $0x38] sm:$0xff]
    %v114 = vld [vmem:[%s2] sm:$0x1]
    %v116 = vlaneseq
    %v117 = vshrl.u32 %v116, 7
    %v118 = vsub.s32 0, %v117
    %v119 = vrot.slane %v114, %v118
    %vm121 = vcmask 523264
    %v123 = vsel %vm121, %v104, 0
    %v126 = vsel %vm121, %v105, 0
    %128 = vmatprep.subr.mxu0 0.0
    %129 = vmatpush1.msra.mxu0 %v106
    %130 = vmatprep.subr.mxu0 0.0
    %131 = vmatpush1.msra.mxu0 %v107
    %132 = vmatprep.subr.mxu0 0.0
    %133 = vmatpush1.msra.mxu0 %v108
    %134 = vmatprep.subr.mxu0 0.0
    %135 = vmatpush1.msra.mxu0 %v109
    %136 = vmatprep.subr.mxu0 0.0
    %137 = vmatpush1.msra.mxu0 %v110
    %138 = vmatprep.subr.mxu0 0.0
    %139 = vmatpush1.msra.mxu0 %v111
    %140 = vmatprep.subr.mxu0 0.0
    %141 = vmatpush1.msra.mxu0 %v112
    %142 = vmatprep.subr.mxu0 0.0
    %143 = vmatpush1.msra.mxu0 %v113
    %144 = vmatprep.subr.mxu0 0.0
    %145 = vmatpush1.msra.mxu0 0.0
    %146 = vmatprep.subr.mxu0 0.0
    %147 = vmatpush1.msra.mxu0 0.0
    %148 = vmatprep.subr.mxu0 0.0
    %149 = vmatpush1.msra.mxu0 0.0
    %150 = vmatprep.subr.mxu0 0.0
    %151 = vmatpush1.msra.mxu0 0.0
    %152 = vmatprep.subr.mxu0 0.0
    %153 = vmatpush1.msra.mxu0 0.0
    %154 = vmatprep.subr.mxu0 0.0
    %155 = vmatpush1.msra.mxu0 0.0
    %156 = vmatprep.subr.mxu0 0.0
    %157 = vmatpush1.msra.mxu0 0.0
    %158 = vmatprep.subr.mxu0 0.0
    %159 = vmatpush1.msra.mxu0 0.0
    %160 = vmatprep.subr.mxu0 0.0
    %161 = vmatpush1.msra.mxu0 0.0
    %162 = vmatprep.subr.mxu0 0.0
    %163 = vmatpush1.msra.mxu0 0.0
    %164 = vmatprep.subr.mxu0 0.0
    %165 = vmatpush1.msra.mxu0 0.0
    %166 = vmatprep.subr.mxu0 0.0
    %167 = vmatpush1.msra.mxu0 0.0
    %168 = vmatprep.subr.mxu0 0.0
    %169 = vmatpush1.msra.mxu0 0.0
    %170 = vmatprep.subr.mxu0 0.0
    %171 = vmatpush1.msra.mxu0 0.0
    %172 = vmatprep.subr.mxu0 0.0
    %173 = vmatpush1.msra.mxu0 0.0
    %174 = vmatprep.subr.mxu0 0.0
    %175 = vmatpush1.msra.mxu0 0.0
    %176 = vmatprep.subr.mxu0 0.0
    %177 = vmatpush1.msra.mxu0 0.0
    %178 = vmatprep.subr.mxu0 0.0
    %179 = vmatpush1.msra.mxu0 0.0
    %180 = vmatprep.subr.mxu0 0.0
    %181 = vmatpush1.msra.mxu0 0.0
    %182 = vmatprep.subr.mxu0 0.0
    %183 = vmatpush1.msra.mxu0 0.0
    %184 = vmatprep.subr.mxu0 0.0
    %185 = vmatpush1.msra.mxu0 0.0
    %186 = vmatprep.subr.mxu0 0.0
    %187 = vmatpush1.msra.mxu0 0.0
    %188 = vmatprep.subr.mxu0 0.0
    %189 = vmatpush1.msra.mxu0 0.0
    %190 = vmatprep.subr.mxu0 0.0
    %191 = vmatpush1.msra.mxu0 0.0
    %192 = vmatprep.mubr.f32.mxu0 0.0
    %193 = vmatmul.mubr.f32.gmra.mrb[0].mxu0 %v123
    %v194 = vpop.f32.mrb[0].mxu0
    %v195 = vadd.f32 %v119, %v194
    %v196 = vpop.f32.mrb[0].mxu0
    %197 = vmatprep.mubr.f32.mxu0 0.0
    %198 = vmatmul.mubr.f32.gmra.mrb[0].mxu0 %v126
    %v199 = vpop.f32.mrb[0].mxu0
    %v200 = vadd.f32 %v119, %v199
    %v201 = vpop.f32.mrb[0].mxu0
    %202 = vdwg.mxu0
    %v203 = vmax.f32 %v195, 0.0
    %v204 = vmax.f32 %v200, 0.0
    %v205 = vld [vmem:[#allocation7] sm:$0xff]
    %v206 = vld [vmem:[#allocation7 + $0x8] sm:$0xff]
    %v207 = vld [vmem:[#allocation7 + $0x10] sm:$0xff]
    %v208 = vld [vmem:[#allocation7 + $0x18] sm:$0xff]
    %v209 = vld [vmem:[#allocation7 + $0x20] sm:$0xff]
    %v210 = vld [vmem:[#allocation7 + $0x28] sm:$0xff]
    %v211 = vld [vmem:[#allocation7 + $0x30] sm:$0xff]
    %v212 = vld [vmem:[#allocation7 + $0x38] sm:$0xff]
    %v213 = vld [vmem:[#allocation7 + $0x40] sm:$0xff]
    %v214 = vld [vmem:[#allocation7 + $0x48] sm:$0xff]
    %v215 = vld [vmem:[#allocation7 + $0x50] sm:$0xff]
    %v216 = vld [vmem:[#allocation7 + $0x58] sm:$0xff]
    %v217 = vld [vmem:[#allocation7 + $0x60] sm:$0xff]
    %v218 = vld [vmem:[#allocation7 + $0x68] sm:$0xff]
    %v219 = vld [vmem:[#allocation7 + $0x70] sm:$0xff]
    %v220 = vld [vmem:[#allocation7 + $0x78] sm:$0xff]
    %v221 = vld [vmem:[%s4] sm:$0x1]
    %v223 = vlaneseq
    %v224 = vshrl.u32 %v223, 7
    %v225 = vsub.s32 0, %v224
    %v226 = vrot.slane %v221, %v225
    %228 = vmatprep.subr.mxu0 0.0
    %229 = vmatpush1.msra.mxu0 %v205
    %230 = vmatprep.subr.mxu0 0.0
    %231 = vmatpush1.msra.mxu0 %v206
    %232 = vmatprep.subr.mxu0 0.0
    %233 = vmatpush1.msra.mxu0 %v207
    %234 = vmatprep.subr.mxu0 0.0
    %235 = vmatpush1.msra.mxu0 %v208
    %236 = vmatprep.subr.mxu0 0.0
    %237 = vmatpush1.msra.mxu0 %v209
    %238 = vmatprep.subr.mxu0 0.0
    %239 = vmatpush1.msra.mxu0 %v210
    %240 = vmatprep.subr.mxu0 0.0
    %241 = vmatpush1.msra.mxu0 %v211
    %242 = vmatprep.subr.mxu0 0.0
    %243 = vmatpush1.msra.mxu0 %v212
    %244 = vmatprep.subr.mxu0 0.0
    %245 = vmatpush1.msra.mxu0 %v213
    %246 = vmatprep.subr.mxu0 0.0
    %247 = vmatpush1.msra.mxu0 %v214
    %248 = vmatprep.subr.mxu0 0.0
    %249 = vmatpush1.msra.mxu0 %v215
    %250 = vmatprep.subr.mxu0 0.0
    %251 = vmatpush1.msra.mxu0 %v216
    %252 = vmatprep.subr.mxu0 0.0
    %253 = vmatpush1.msra.mxu0 %v217
    %254 = vmatprep.subr.mxu0 0.0
    %255 = vmatpush1.msra.mxu0 %v218
    %256 = vmatprep.subr.mxu0 0.0
    %257 = vmatpush1.msra.mxu0 %v219
    %258 = vmatprep.subr.mxu0 0.0
    %259 = vmatpush1.msra.mxu0 %v220
    %260 = vmatprep.subr.mxu0 0.0
    %261 = vmatpush1.msra.mxu0 0.0
    %262 = vmatprep.subr.mxu0 0.0
    %263 = vmatpush1.msra.mxu0 0.0
    %264 = vmatprep.subr.mxu0 0.0
    %265 = vmatpush1.msra.mxu0 0.0
    %266 = vmatprep.subr.mxu0 0.0
    %267 = vmatpush1.msra.mxu0 0.0
    %268 = vmatprep.subr.mxu0 0.0
    %269 = vmatpush1.msra.mxu0 0.0
    %270 = vmatprep.subr.mxu0 0.0
    %271 = vmatpush1.msra.mxu0 0.0
    %272 = vmatprep.subr.mxu0 0.0
    %273 = vmatpush1.msra.mxu0 0.0
    %274 = vmatprep.subr.mxu0 0.0
    %275 = vmatpush1.msra.mxu0 0.0
    %276 = vmatprep.subr.mxu0 0.0
    %277 = vmatpush1.msra.mxu0 0.0
    %278 = vmatprep.subr.mxu0 0.0
    %279 = vmatpush1.msra.mxu0 0.0
    %280 = vmatprep.subr.mxu0 0.0
    %281 = vmatpush1.msra.mxu0 0.0
    %282 = vmatprep.subr.mxu0 0.0
    %283 = vmatpush1.msra.mxu0 0.0
    %284 = vmatprep.subr.mxu0 0.0
    %285 = vmatpush1.msra.mxu0 0.0
    %286 = vmatprep.subr.mxu0 0.0
    %287 = vmatpush1.msra.mxu0 0.0
    %288 = vmatprep.subr.mxu0 0.0
    %289 = vmatpush1.msra.mxu0 0.0
    %290 = vmatprep.subr.mxu0 0.0
    %291 = vmatpush1.msra.mxu0 0.0
    %292 = vmatprep.mubr.f32.mxu0 0.0
    %293 = vmatmul.mubr.f32.gmra.mrb[0].mxu0 %v203
    %v294 = vpop.f32.mrb[0].mxu0
    %v295 = vadd.f32 %v226, %v294
    %v296 = vpop.f32.mrb[0].mxu0
    %297 = vmatprep.mubr.f32.mxu0 0.0
    %298 = vmatmul.mubr.f32.gmra.mrb[0].mxu0 %v204
    %v299 = vpop.f32.mrb[0].mxu0
    %v300 = vadd.f32 %v226, %v299
    %v301 = vpop.f32.mrb[0].mxu0
    %302 = vdwg.mxu0
    %v303 = vld [vmem:[#allocation8] sm:$0xff]
    %v304 = vld [vmem:[#allocation8 + $0x8] sm:$0xff]
    %v305 = vld [vmem:[#allocation8 + $0x10] sm:$0xff]
    %v306 = vld [vmem:[#allocation8 + $0x18] sm:$0xff]
    %v307 = vld [vmem:[#allocation8 + $0x20] sm:$0xff]
    %v308 = vld [vmem:[#allocation8 + $0x28] sm:$0xff]
    %v309 = vld [vmem:[#allocation8 + $0x30] sm:$0xff]
    %v310 = vld [vmem:[#allocation8 + $0x38] sm:$0xff]
    %v311 = vld [vmem:[#allocation8 + $0x40] sm:$0xff]
    %v312 = vld [vmem:[#allocation8 + $0x48] sm:$0xff]
    %v313 = vld [vmem:[#allocation8 + $0x50] sm:$0xff]
    %v314 = vld [vmem:[#allocation8 + $0x58] sm:$0xff]
    %v315 = vld [vmem:[#allocation8 + $0x60] sm:$0xff]
    %v316 = vld [vmem:[#allocation8 + $0x68] sm:$0xff]
    %v317 = vld [vmem:[#allocation8 + $0x70] sm:$0xff]
    %v318 = vld [vmem:[#allocation8 + $0x78] sm:$0xff]
    %v319 = vld [vmem:[%s6] sm:$0x1]
    %v321 = vlaneseq
    %v322 = vshrl.u32 %v321, 7
    %v323 = vsub.s32 0, %v322
    %v324 = vrot.slane %v319, %v323
    %326 = vmatprep.subr.mxu0 0.0
    %327 = vmatpush1.msra.mxu0 %v303
    %328 = vmatprep.subr.mxu0 0.0
    %329 = vmatpush1.msra.mxu0 %v304
    %330 = vmatprep.subr.mxu0 0.0
    %331 = vmatpush1.msra.mxu0 %v305
    %332 = vmatprep.subr.mxu0 0.0
    %333 = vmatpush1.msra.mxu0 %v306
    %334 = vmatprep.subr.mxu0 0.0
    %335 = vmatpush1.msra.mxu0 %v307
    %336 = vmatprep.subr.mxu0 0.0
    %337 = vmatpush1.msra.mxu0 %v308
    %338 = vmatprep.subr.mxu0 0.0
    %339 = vmatpush1.msra.mxu0 %v309
    %340 = vmatprep.subr.mxu0 0.0
    %341 = vmatpush1.msra.mxu0 %v310
    %342 = vmatprep.subr.mxu0 0.0
    %343 = vmatpush1.msra.mxu0 %v311
    %344 = vmatprep.subr.mxu0 0.0
    %345 = vmatpush1.msra.mxu0 %v312
    %346 = vmatprep.subr.mxu0 0.0
    %347 = vmatpush1.msra.mxu0 %v313
    %348 = vmatprep.subr.mxu0 0.0
    %349 = vmatpush1.msra.mxu0 %v314
    %350 = vmatprep.subr.mxu0 0.0
    %351 = vmatpush1.msra.mxu0 %v315
    %352 = vmatprep.subr.mxu0 0.0
    %353 = vmatpush1.msra.mxu0 %v316
    %354 = vmatprep.subr.mxu0 0.0
    %355 = vmatpush1.msra.mxu0 %v317
    %356 = vmatprep.subr.mxu0 0.0
    %357 = vmatpush1.msra.mxu0 %v318
    %358 = vmatprep.subr.mxu0 0.0
    %359 = vmatpush1.msra.mxu0 0.0
    %360 = vmatprep.subr.mxu0 0.0
    %361 = vmatpush1.msra.mxu0 0.0
    %362 = vmatprep.subr.mxu0 0.0
    %363 = vmatpush1.msra.mxu0 0.0
    %364 = vmatprep.subr.mxu0 0.0
    %365 = vmatpush1.msra.mxu0 0.0
    %366 = vmatprep.subr.mxu0 0.0
    %367 = vmatpush1.msra.mxu0 0.0
    %368 = vmatprep.subr.mxu0 0.0
    %369 = vmatpush1.msra.mxu0 0.0
    %370 = vmatprep.subr.mxu0 0.0
    %371 = vmatpush1.msra.mxu0 0.0
    %372 = vmatprep.subr.mxu0 0.0
    %373 = vmatpush1.msra.mxu0 0.0
    %374 = vmatprep.subr.mxu0 0.0
    %375 = vmatpush1.msra.mxu0 0.0
    %376 = vmatprep.subr.mxu0 0.0
    %377 = vmatpush1.msra.mxu0 0.0
    %378 = vmatprep.subr.mxu0 0.0
    %379 = vmatpush1.msra.mxu0 0.0
    %380 = vmatprep.subr.mxu0 0.0
    %381 = vmatpush1.msra.mxu0 0.0
    %382 = vmatprep.subr.mxu0 0.0
    %383 = vmatpush1.msra.mxu0 0.0
    %384 = vmatprep.subr.mxu0 0.0
    %385 = vmatpush1.msra.mxu0 0.0
    %386 = vmatprep.subr.mxu0 0.0
    %387 = vmatpush1.msra.mxu0 0.0
    %388 = vmatprep.subr.mxu0 0.0
    %389 = vmatpush1.msra.mxu0 0.0
    %390 = vmatprep.mubr.f32.mxu0 0.0
    %391 = vmatmul.mubr.f32.gmra.mrb[0].mxu0 %v295
    %v392 = vpop.f32.mrb[0].mxu0
    %v393 = vadd.f32 %v324, %v392
    %v394 = vpop.f32.mrb[0].mxu0
    %395 = vmatprep.mubr.f32.mxu0 0.0
    %396 = vmatmul.mubr.f32.gmra.mrb[0].mxu0 %v300
    %v397 = vpop.f32.mrb[0].mxu0
    %v398 = vadd.f32 %v324, %v397
    %v399 = vpop.f32.mrb[0].mxu0
    %400 = vdwg.mxu0
    %v401 = vmax.f32 %v393, 0.0
    %v402 = vmax.f32 %v398, 0.0
    %v403 = vld [vmem:[#allocation10] sm:$0xff]
    %v404 = vld [vmem:[#allocation10 + $0x8] sm:$0xff]
    %v405 = vld [vmem:[#allocation10 + $0x10] sm:$0xff]
    %v406 = vld [vmem:[#allocation10 + $0x18] sm:$0xff]
    %v407 = vld [vmem:[#allocation10 + $0x20] sm:$0xff]
    %v408 = vld [vmem:[#allocation10 + $0x28] sm:$0xff]
    %v409 = vld [vmem:[#allocation10 + $0x30] sm:$0xff]
    %v410 = vld [vmem:[#allocation10 + $0x38] sm:$0xff]
    %v411 = vld [vmem:[#allocation10 + $0x40] sm:$0xff]
    %v412 = vld [vmem:[#allocation10 + $0x48] sm:$0xff]
    %v413 = vld [vmem:[#allocation10 + $0x50] sm:$0xff]
    %v414 = vld [vmem:[#allocation10 + $0x58] sm:$0xff]
    %v415 = vld [vmem:[#allocation10 + $0x60] sm:$0xff]
    %v416 = vld [vmem:[#allocation10 + $0x68] sm:$0xff]
    %v417 = vld [vmem:[#allocation10 + $0x70] sm:$0xff]
    %v418 = vld [vmem:[#allocation10 + $0x78] sm:$0xff]
    %v419 = vld [vmem:[%s8] sm:$0x1]
    %v421 = vlaneseq
    %v422 = vshrl.u32 %v421, 7
    %v423 = vsub.s32 0, %v422
    %v424 = vrot.slane %v419, %v423
    %426 = vmatprep.subr.mxu0 0.0
    %427 = vmatpush1.msra.mxu0 %v403
    %428 = vmatprep.subr.mxu0 0.0
    %429 = vmatpush1.msra.mxu0 %v404
    %430 = vmatprep.subr.mxu0 0.0
    %431 = vmatpush1.msra.mxu0 %v405
    %432 = vmatprep.subr.mxu0 0.0
    %433 = vmatpush1.msra.mxu0 %v406
    %434 = vmatprep.subr.mxu0 0.0
    %435 = vmatpush1.msra.mxu0 %v407
    %436 = vmatprep.subr.mxu0 0.0
    %437 = vmatpush1.msra.mxu0 %v408
    %438 = vmatprep.subr.mxu0 0.0
    %439 = vmatpush1.msra.mxu0 %v409
    %440 = vmatprep.subr.mxu0 0.0
    %441 = vmatpush1.msra.mxu0 %v410
    %442 = vmatprep.subr.mxu0 0.0
    %443 = vmatpush1.msra.mxu0 %v411
    %444 = vmatprep.subr.mxu0 0.0
    %445 = vmatpush1.msra.mxu0 %v412
    %446 = vmatprep.subr.mxu0 0.0
    %447 = vmatpush1.msra.mxu0 %v413
    %448 = vmatprep.subr.mxu0 0.0
    %449 = vmatpush1.msra.mxu0 %v414
    %450 = vmatprep.subr.mxu0 0.0
    %451 = vmatpush1.msra.mxu0 %v415
    %452 = vmatprep.subr.mxu0 0.0
    %453 = vmatpush1.msra.mxu0 %v416
    %454 = vmatprep.subr.mxu0 0.0
    %455 = vmatpush1.msra.mxu0 %v417
    %456 = vmatprep.subr.mxu0 0.0
    %457 = vmatpush1.msra.mxu0 %v418
    %458 = vmatprep.subr.mxu0 0.0
    %459 = vmatpush1.msra.mxu0 0.0
    %460 = vmatprep.subr.mxu0 0.0
    %461 = vmatpush1.msra.mxu0 0.0
    %462 = vmatprep.subr.mxu0 0.0
    %463 = vmatpush1.msra.mxu0 0.0
    %464 = vmatprep.subr.mxu0 0.0
    %465 = vmatpush1.msra.mxu0 0.0
    %466 = vmatprep.subr.mxu0 0.0
    %467 = vmatpush1.msra.mxu0 0.0
    %468 = vmatprep.subr.mxu0 0.0
    %469 = vmatpush1.msra.mxu0 0.0
    %470 = vmatprep.subr.mxu0 0.0
    %471 = vmatpush1.msra.mxu0 0.0
    %472 = vmatprep.subr.mxu0 0.0
    %473 = vmatpush1.msra.mxu0 0.0
    %474 = vmatprep.subr.mxu0 0.0
    %475 = vmatpush1.msra.mxu0 0.0
    %476 = vmatprep.subr.mxu0 0.0
    %477 = vmatpush1.msra.mxu0 0.0
    %478 = vmatprep.subr.mxu0 0.0
    %479 = vmatpush1.msra.mxu0 0.0
    %480 = vmatprep.subr.mxu0 0.0
    %481 = vmatpush1.msra.mxu0 0.0
    %482 = vmatprep.subr.mxu0 0.0
    %483 = vmatpush1.msra.mxu0 0.0
    %484 = vmatprep.subr.mxu0 0.0
    %485 = vmatpush1.msra.mxu0 0.0
    %486 = vmatprep.subr.mxu0 0.0
    %487 = vmatpush1.msra.mxu0 0.0
    %488 = vmatprep.subr.mxu0 0.0
    %489 = vmatpush1.msra.mxu0 0.0
    %490 = vmatprep.mubr.f32.mxu0 0.0
    %491 = vmatmul.mubr.f32.gmra.mrb[0].mxu0 %v401
    %v492 = vpop.f32.mrb[0].mxu0
    %v493 = vadd.f32 %v424, %v492
    %v494 = vpop.f32.mrb[0].mxu0
    %495 = vmatprep.mubr.f32.mxu0 0.0
    %496 = vmatmul.mubr.f32.gmra.mrb[0].mxu0 %v402
    %v497 = vpop.f32.mrb[0].mxu0
    %v498 = vadd.f32 %v424, %v497
    %v499 = vpop.f32.mrb[0].mxu0
    %500 = vdwg.mxu0
    %v501 = vxor.u32 %v493, 2147483648
    %v502 = vxor.u32 %v498, 2147483648
    %v503 = vmul.f32 %v501, 1.442695
    %v504 = vpow.pop %v503
    %v505 = vmul.f32 %v502, 1.442695
    %v506 = vpow.pop %v505
    %v507 = vadd.f32 %v504, 1.0
    %v508 = vadd.f32 %v506, 1.0
    %v509 = vrcp.pop %v507
    %v510 = vmul.f32 1.0, %v509
    %v511 = vrcp.pop %v508
    %v512 = vmul.f32 1.0, %v511
    %513 = vst [vmem:[#allocation11] sm:$0xff] %v295
    %514 = vst [vmem:[#allocation11 + $0x8] sm:$0xff] %v300
    %515 = vst [vmem:[#allocation12] sm:$0xff] %v510
    %516 = vst [vmem:[#allocation12 + $0x8] sm:$0xff] %v512
    // Predicated region
    $region58: #{tpu_custom_call.1} parent=1 // pred_check
      _
    $region59: #{tpu_custom_call.1} parent=1 // pred_check_branch
      %518 = sbr.rel (0) target = $region61
    $region60: #{tpu_custom_call.1} parent=1 // pred_region
      %s520 = ssub.s32 256, 256
      %521 = vsyncadd [#allocation4], %s520
      %s522 = sshll.u32 [#allocation11], 4
      %s523 = int_to_ptr.vmem [resolvable:$true] %s522
      %528 = dma.vmem_to_hbm [thread:$0]  %s523, 256, %s9, [#allocation4], 128, 128, 8
    $region61: #{tpu_custom_call.1} parent=1 // pred_fallthru
      _
    // Predicated region
    $region62: #{tpu_custom_call.1} parent=1 // pred_check
      _
    $region63: #{tpu_custom_call.1} parent=1 // pred_check_branch
      %530 = sbr.rel (0) target = $region65
    $region64: #{tpu_custom_call.1} parent=1 // pred_region
      %s532 = ssub.s32 256, 256
      %533 = vsyncadd [#allocation13], %s532
      %s534 = sshll.u32 [#allocation12], 4
      %s535 = int_to_ptr.vmem [resolvable:$true] %s534
      %540 = dma.vmem_to_hbm [thread:$0]  %s535, 256, %s10, [#allocation13], 128, 128, 8
    $region65: #{tpu_custom_call.1} parent=1 // pred_fallthru
      _
    // Predicated region
    $region66: #{tpu_custom_call.1} parent=1 // pred_check
      _
    $region67: #{tpu_custom_call.1} parent=1 // pred_check_branch
      %542 = sbr.rel (0) target = $region69
    $region68: #{tpu_custom_call.1} parent=1 // pred_region
      %543 = dma.done [#allocation4], 256
    $region69: #{tpu_custom_call.1} parent=1 // pred_fallthru
      _
    // Predicated region
    $region70: #{tpu_custom_call.1} parent=1 // pred_check
      _
    $region71: #{tpu_custom_call.1} parent=1 // pred_check_branch
      %545 = sbr.rel (0) target = $region73
    $region72: #{tpu_custom_call.1} parent=1 // pred_region
      %546 = dma.done [#allocation13], 256
    $region73: #{tpu_custom_call.1} parent=1 // pred_fallthru
      _
    %547 = vsyncpa [#allocation3], 1
    %548 = vsyncpa [#allocation6], 1
    %549 = vsyncpa [#allocation9], 1
    %550 = vsyncpa [#allocation4], 1
    %551 = vsyncpa [#allocation13], 1

</llo_original>
